<compile_context>
chip_gen: v7x
topology: tpu7x:2x2x1
jax: 0.10.0
libtpu: 0.0.40
codegen_flags: <defaults>
</compile_context>

<pallas_src>
import functools

import jax
import jax.numpy as jnp
import numpy as np
from jax.experimental import pallas as pl
from jax.experimental.pallas import tpu as pltpu

BN_EPS = 1e-5


# ---------------------------------------------------------------------------
# Kernel
# ---------------------------------------------------------------------------
def _classifier_kernel(img1_ref, img2_ref, text1_ref, text2_ref,
                       w_img_a_ref, w_img_b_ref, w_text_a_ref, w_text_b_ref, b_emb_ref,
                       ws_ref, bs_ref, alpha_ref, w_sc_ref, b_sc_ref,
                       out_ref, *, nlayers: int):
    # Embedders: concat((a, b), dim=-1) @ W  ==  a @ W_top + b @ W_bot  (bf16 MXU, f32 acc)
    img_emb = (jnp.dot(img1_ref[...].astype(jnp.bfloat16), w_img_a_ref[...],
                       preferred_element_type=jnp.float32)
               + jnp.dot(img2_ref[...].astype(jnp.bfloat16), w_img_b_ref[...],
                         preferred_element_type=jnp.float32))
    text_emb = (jnp.dot(text1_ref[...].astype(jnp.bfloat16), w_text_a_ref[...],
                        preferred_element_type=jnp.float32)
                + jnp.dot(text2_ref[...].astype(jnp.bfloat16), w_text_b_ref[...],
                          preferred_element_type=jnp.float32))

    # x = concat((img_emb, text_emb), axis=1) + embedder biases
    x = jnp.concatenate([img_emb, text_emb], axis=-1) + b_emb_ref[...]

    # nlayers x [Linear (BN folded in) -> PReLU]; Dropout(0.3) is identity in eval mode.
    for l in range(nlayers):
        x = jnp.dot(x.astype(jnp.bfloat16), ws_ref[l],
                    preferred_element_type=jnp.float32) + bs_ref[l]
        a = alpha_ref[l]                                  # (1, 1) shared PReLU slope
        x = jnp.where(x >= 0.0, x, a * x)

    # Scorer (N=1): VPU multiply + lane reduce instead of a 1-column MXU matmul.
    s = jnp.sum(x * w_sc_ref[...], axis=-1, keepdims=True) + b_sc_ref[...]
    out_ref[...] = jax.nn.sigmoid(s)


# ---------------------------------------------------------------------------
# VMEM budgeting (feedback: explicit budget for v5e's 16 MiB scoped / v7x's 64 MiB physical)
# ---------------------------------------------------------------------------
def _vmem_limit_bytes(kp, tb, input_feats):
    hidden = kp["ws"].shape[-1]
    weight_bytes = sum(int(v.size) * v.dtype.itemsize for v in kp.values())
    io_bytes = 2 * (sum(tb * f * 4 for f in input_feats) + tb * 4)   # double-buffered tiles
    act_bytes = 4 * tb * hidden * 4                                  # in-kernel temporaries
    estimate = int(1.5 * (weight_bytes + io_bytes + act_bytes))
    if estimate <= 16 * 1024 * 1024:
        return None                    # fits everywhere with the default scoped VMEM
    return min(estimate, 48 * 1024 * 1024)


# ---------------------------------------------------------------------------
# Wrapper
# ---------------------------------------------------------------------------
def pairwise_classifier_forward(text_emb1, img_emb1, text_emb2, img_emb2, kp,
                                *, block_batch=128):
    nlayers = kp["ws"].shape[0]
    batch = text_emb1.shape[0]

    tb = block_batch
    padded = pl.cdiv(batch, tb) * tb
    if padded != batch:
        pad = ((0, padded - batch), (0, 0))
        text_emb1 = jnp.pad(text_emb1, pad)
        img_emb1 = jnp.pad(img_emb1, pad)
        text_emb2 = jnp.pad(text_emb2, pad)
        img_emb2 = jnp.pad(img_emb2, pad)

    def batch_spec(feat):
        return pl.BlockSpec((tb, feat), lambda i: (i, 0))

    def resident_spec(arr):
        # Same block index every grid step -> stays resident in VMEM (no re-DMA).
        return pl.BlockSpec(arr.shape, lambda i, n=arr.ndim: (0,) * n)

    weights = (kp["w_img_a"], kp["w_img_b"], kp["w_text_a"], kp["w_text_b"],
               kp["b_emb"], kp["ws"], kp["bs"], kp["alpha"], kp["w_sc"], kp["b_sc"])

    in_specs = ([batch_spec(img_emb1.shape[1]), batch_spec(img_emb2.shape[1]),
                 batch_spec(text_emb1.shape[1]), batch_spec(text_emb2.shape[1])]
                + [resident_spec(w) for w in weights])

    input_feats = [img_emb1.shape[1], img_emb2.shape[1],
                   text_emb1.shape[1], text_emb2.shape[1]]

    out = pl.pallas_call(
        functools.partial(_classifier_kernel, nlayers=nlayers),
        out_shape=jax.ShapeDtypeStruct((padded, 1), jnp.float32),
        grid=(padded // tb,),
        in_specs=in_specs,
        out_specs=pl.BlockSpec((tb, 1), lambda i: (i, 0)),
        compiler_params=pltpu.CompilerParams(
            dimension_semantics=("parallel",),
            vmem_limit_bytes=_vmem_limit_bytes(kp, tb, input_feats)),
    )(img_emb1, img_emb2, text_emb1, text_emb2, *weights)

    return out[:batch]


# ---------------------------------------------------------------------------
# Parameters: raw (torch-like, f32) and kernel-ready (BN folded, bf16 matmul weights)
# ---------------------------------------------------------------------------
def make_raw_params(key, text_emb_size, img_emb_size, hidden_size, nlayers,
                    img_embed_dim=None):
    """Torch-like parameters (f32). Linear weights stored (in_features, out_features)."""
    img_emb_dim = hidden_size // 2 if not img_embed_dim else img_embed_dim
    text_emb_dim = hidden_size - img_emb_dim
    assert text_emb_dim > 0

    keys = iter(jax.random.split(key, 12))

    def linear_w(rng, fan_in, fan_out):
        return ((1.0 / np.sqrt(fan_in))
                * jax.random.normal(rng, (fan_in, fan_out))).astype(jnp.float32)

    p = {}
    p["w_img"] = linear_w(next(keys), 2 * img_emb_size, img_emb_dim)
    p["b_img"] = (0.05 * jax.random.normal(next(keys), (img_emb_dim,))).astype(jnp.float32)
    p["w_text"] = linear_w(next(keys), 2 * text_emb_size, text_emb_dim)
    p["b_text"] = (0.05 * jax.random.normal(next(keys), (text_emb_dim,))).astype(jnp.float32)

    p["ws"] = ((1.0 / np.sqrt(hidden_size))
               * jax.random.normal(next(keys), (nlayers, hidden_size, hidden_size))
               ).astype(jnp.float32)
    p["bs"] = (0.05 * jax.random.normal(next(keys), (nlayers, hidden_size))).astype(jnp.float32)
    p["gamma"] = (1.0 + 0.05 * jax.random.normal(next(keys), (nlayers, hidden_size))
                  ).astype(jnp.float32)
    p["beta"] = (0.05 * jax.random.normal(next(keys), (nlayers, hidden_size))).astype(jnp.float32)
    p["rmean"] = (0.05 * jax.random.normal(next(keys), (nlayers, hidden_size))).astype(jnp.float32)
    p["rvar"] = (1.0 + 0.1 * jax.random.uniform(next(keys), (nlayers, hidden_size))
                 ).astype(jnp.float32)
    p["alpha"] = jnp.full((nlayers,), 0.25, jnp.float32)   # PReLU default shared slope

    p["w_sc"] = linear_w(next(keys), hidden_size, 1)
    p["b_sc"] = (0.05 * jax.random.normal(next(keys), (1,))).astype(jnp.float32)
    return p


def prepare_kernel_params(p):
    """Offline parameter glue: fold BN (eval) into Linears, split embedder weights, cast to bf16."""
    img_in = p["w_img"].shape[0] // 2
    text_in = p["w_text"].shape[0] // 2
    nlayers, hidden, _ = p["ws"].shape

    scale = p["gamma"] * jax.lax.rsqrt(p["rvar"] + BN_EPS)               # (L, H)
    ws_fused = (p["ws"] * scale[:, None, :]).astype(jnp.bfloat16)        # (L, H, H)
    bs_fused = ((p["bs"] - p["rmean"]) * scale + p["beta"])[:, None, :]  # (L, 1, H) f32

    return dict(
        w_img_a=p["w_img"][:img_in].astype(jnp.bfloat16),
        w_img_b=p["w_img"][img_in:].astype(jnp.bfloat16),
        w_text_a=p["w_text"][:text_in].astype(jnp.bfloat16),
        w_text_b=p["w_text"][text_in:].astype(jnp.bfloat16),
        b_emb=jnp.concatenate([p["b_img"], p["b_text"]])[None, :].astype(jnp.float32),
        ws=ws_fused,
        bs=bs_fused.astype(jnp.float32),
        alpha=p["alpha"].reshape(nlayers, 1, 1).astype(jnp.float32),
        w_sc=p["w_sc"].reshape(1, hidden).astype(jnp.float32),
        b_sc=p["b_sc"].reshape(1, 1).astype(jnp.float32),
    )


# ---------------------------------------------------------------------------
# Pure-JAX reference mirroring the PyTorch forward (eval mode, f32)
# ---------------------------------------------------------------------------
def reference_forward(text_emb1, img_emb1, text_emb2, img_emb2, p):
    img_emb = jnp.concatenate([img_emb1, img_emb2], axis=-1) @ p["w_img"] + p["b_img"]
    text_emb = jnp.concatenate([text_emb1, text_emb2], axis=-1) @ p["w_text"] + p["b_text"]
    x = jnp.concatenate([img_emb, text_emb], axis=1)
    for l in range(p["ws"].shape[0]):
        x = x @ p["ws"][l] + p["bs"][l]
        x = (x - p["rmean"][l]) / jnp.sqrt(p["rvar"][l] + BN_EPS) * p["gamma"][l] + p["beta"][l]
        x = jnp.where(x >= 0.0, x, p["alpha"][l] * x)
        # Dropout(0.3): identity in eval mode.
    s = x @ p["w_sc"] + p["b_sc"]
    return jax.nn.sigmoid(s)


# ---------------------------------------------------------------------------
# Demo / correctness check
# ---------------------------------------------------------------------------
if __name__ == "__main__":
    # Small but MXU/lane-friendly shapes (hidden//2 = 128 -> lane-aligned concat).
    TEXT_EMB_SIZE = 64
    IMG_EMB_SIZE = 64
    HIDDEN_SIZE = 256
    NLAYERS = 2
    BATCH = 256
    BLOCK_BATCH = 128   # 2 grid steps -> exercises auto double-buffering + megacore split

    key = jax.random.PRNGKey(0)
    k_in, k_par = jax.random.split(key)
    ki = jax.random.split(k_in, 4)
    text_emb1 = jax.random.normal(ki[0], (BATCH, TEXT_EMB_SIZE), jnp.float32)
    img_emb1 = jax.random.normal(ki[1], (BATCH, IMG_EMB_SIZE), jnp.float32)
    text_emb2 = jax.random.normal(ki[2], (BATCH, TEXT_EMB_SIZE), jnp.float32)
    img_emb2 = jax.random.normal(ki[3], (BATCH, IMG_EMB_SIZE), jnp.float32)

    raw = make_raw_params(k_par, TEXT_EMB_SIZE, IMG_EMB_SIZE, HIDDEN_SIZE, NLAYERS)
    kp = prepare_kernel_params(raw)

    out = pairwise_classifier_forward(text_emb1, img_emb1, text_emb2, img_emb2, kp,
                                      block_batch=BLOCK_BATCH)
    out = jax.block_until_ready(out)

    ref = reference_forward(text_emb1, img_emb1, text_emb2, img_emb2, raw)
    np.testing.assert_allclose(np.asarray(out), np.asarray(ref), rtol=2e-2, atol=2e-2)
    assert out.shape == (BATCH, 1)

    print("KERNEL_OK")
</pallas_src>

<mosaic_0001>
module attributes {stable_mosaic.version = 11 : i64} {
  func.func @_classifier_kernel(%arg0: i32, %arg1: memref<128x64xf32, #tpu.memory_space<vmem>>, %arg2: memref<128x64xf32, #tpu.memory_space<vmem>>, %arg3: memref<128x64xf32, #tpu.memory_space<vmem>>, %arg4: memref<128x64xf32, #tpu.memory_space<vmem>>, %arg5: memref<64x128xbf16, #tpu.memory_space<vmem>>, %arg6: memref<64x128xbf16, #tpu.memory_space<vmem>>, %arg7: memref<64x128xbf16, #tpu.memory_space<vmem>>, %arg8: memref<64x128xbf16, #tpu.memory_space<vmem>>, %arg9: memref<1x256xf32, #tpu.memory_space<vmem>>, %arg10: memref<2x256x256xbf16, #tpu.memory_space<vmem>>, %arg11: memref<2x1x256xf32, #tpu.memory_space<vmem>>, %arg12: memref<2x1x1xf32, #tpu.memory_space<vmem>>, %arg13: memref<1x256xf32, #tpu.memory_space<vmem>>, %arg14: memref<1x1xf32, #tpu.memory_space<vmem>>, %arg15: memref<128x1xf32, #tpu.memory_space<vmem>>) attributes {dimension_semantics = [#tpu.dimension_semantics<parallel>], iteration_bounds = array<i64: 2>, scalar_prefetch = 0 : i64, scratch_operands = 0 : i64, tpu.core_type = #tpu.core_type<tc>, window_params = [{transform_indices = @transform_0, window_bounds = array<i64: 128, 64>}, {transform_indices = @transform_1, window_bounds = array<i64: 128, 64>}, {transform_indices = @transform_2, window_bounds = array<i64: 128, 64>}, {transform_indices = @transform_3, window_bounds = array<i64: 128, 64>}, {pipeline_mode = #tpu.pipeline_mode<synchronous>, transform_indices = @transform_4, window_bounds = array<i64: 64, 128>}, {pipeline_mode = #tpu.pipeline_mode<synchronous>, transform_indices = @transform_5, window_bounds = array<i64: 64, 128>}, {pipeline_mode = #tpu.pipeline_mode<synchronous>, transform_indices = @transform_6, window_bounds = array<i64: 64, 128>}, {pipeline_mode = #tpu.pipeline_mode<synchronous>, transform_indices = @transform_7, window_bounds = array<i64: 64, 128>}, {pipeline_mode = #tpu.pipeline_mode<synchronous>, transform_indices = @transform_8, window_bounds = array<i64: 1, 256>}, {pipeline_mode = #tpu.pipeline_mode<synchronous>, transform_indices = @transform_9, window_bounds = array<i64: 2, 256, 256>}, {pipeline_mode = #tpu.pipeline_mode<synchronous>, transform_indices = @transform_10, window_bounds = array<i64: 2, 1, 256>}, {pipeline_mode = #tpu.pipeline_mode<synchronous>, transform_indices = @transform_11, window_bounds = array<i64: 2, 1, 1>}, {pipeline_mode = #tpu.pipeline_mode<synchronous>, transform_indices = @transform_12, window_bounds = array<i64: 1, 256>}, {pipeline_mode = #tpu.pipeline_mode<synchronous>, transform_indices = @transform_13, window_bounds = array<i64: 1, 1>}, {transform_indices = @transform_14, window_bounds = array<i64: 128, 1>}]} {
    %c0 = arith.constant 0 : index
    %c0_0 = arith.constant 0 : index
    %0 = vector.load %arg1[%c0, %c0_0] : memref<128x64xf32, #tpu.memory_space<vmem>>, vector<128x64xf32>
    %1 = arith.truncf %0 : vector<128x64xf32> to vector<128x64xbf16>
    %c0_1 = arith.constant 0 : index
    %c0_2 = arith.constant 0 : index
    %2 = vector.load %arg5[%c0_1, %c0_2] : memref<64x128xbf16, #tpu.memory_space<vmem>>, vector<64x128xbf16>
    %cst = arith.constant dense<0.000000e+00> : vector<128x128xf32>
    %3 = tpu.matmul %1, %2, %cst {dimension_numbers = #tpu.dot_dimension_numbers<[1], [0], [0], [1], [0, 0, 1, 1], [], []>} : vector<128x64xbf16>, vector<64x128xbf16>, vector<128x128xf32> -> vector<128x128xf32>
    %c0_3 = arith.constant 0 : index
    %c0_4 = arith.constant 0 : index
    %4 = vector.load %arg2[%c0_3, %c0_4] : memref<128x64xf32, #tpu.memory_space<vmem>>, vector<128x64xf32>
    %5 = arith.truncf %4 : vector<128x64xf32> to vector<128x64xbf16>
    %c0_5 = arith.constant 0 : index
    %c0_6 = arith.constant 0 : index
    %6 = vector.load %arg6[%c0_5, %c0_6] : memref<64x128xbf16, #tpu.memory_space<vmem>>, vector<64x128xbf16>
    %cst_7 = arith.constant dense<0.000000e+00> : vector<128x128xf32>
    %7 = tpu.matmul %5, %6, %cst_7 {dimension_numbers = #tpu.dot_dimension_numbers<[1], [0], [0], [1], [0, 0, 1, 1], [], []>} : vector<128x64xbf16>, vector<64x128xbf16>, vector<128x128xf32> -> vector<128x128xf32>
    %8 = arith.addf %3, %7 : vector<128x128xf32>
    %c0_8 = arith.constant 0 : index
    %c0_9 = arith.constant 0 : index
    %9 = vector.load %arg3[%c0_8, %c0_9] : memref<128x64xf32, #tpu.memory_space<vmem>>, vector<128x64xf32>
    %10 = arith.truncf %9 : vector<128x64xf32> to vector<128x64xbf16>
    %c0_10 = arith.constant 0 : index
    %c0_11 = arith.constant 0 : index
    %11 = vector.load %arg7[%c0_10, %c0_11] : memref<64x128xbf16, #tpu.memory_space<vmem>>, vector<64x128xbf16>
    %cst_12 = arith.constant dense<0.000000e+00> : vector<128x128xf32>
    %12 = tpu.matmul %10, %11, %cst_12 {dimension_numbers = #tpu.dot_dimension_numbers<[1], [0], [0], [1], [0, 0, 1, 1], [], []>} : vector<128x64xbf16>, vector<64x128xbf16>, vector<128x128xf32> -> vector<128x128xf32>
    %c0_13 = arith.constant 0 : index
    %c0_14 = arith.constant 0 : index
    %13 = vector.load %arg4[%c0_13, %c0_14] : memref<128x64xf32, #tpu.memory_space<vmem>>, vector<128x64xf32>
    %14 = arith.truncf %13 : vector<128x64xf32> to vector<128x64xbf16>
    %c0_15 = arith.constant 0 : index
    %c0_16 = arith.constant 0 : index
    %15 = vector.load %arg8[%c0_15, %c0_16] : memref<64x128xbf16, #tpu.memory_space<vmem>>, vector<64x128xbf16>
    %cst_17 = arith.constant dense<0.000000e+00> : vector<128x128xf32>
    %16 = tpu.matmul %14, %15, %cst_17 {dimension_numbers = #tpu.dot_dimension_numbers<[1], [0], [0], [1], [0, 0, 1, 1], [], []>} : vector<128x64xbf16>, vector<64x128xbf16>, vector<128x128xf32> -> vector<128x128xf32>
    %17 = arith.addf %12, %16 : vector<128x128xf32>
    %18 = tpu.concatenate %8, %17 in 1 : vector<128x128xf32>, vector<128x128xf32> -> vector<128x256xf32>
    %c0_18 = arith.constant 0 : index
    %c0_19 = arith.constant 0 : index
    %19 = vector.load %arg9[%c0_18, %c0_19] : memref<1x256xf32, #tpu.memory_space<vmem>>, vector<1x256xf32>
    %20 = vector.broadcast %19 : vector<1x256xf32> to vector<128x256xf32>
    %21 = arith.addf %18, %20 : vector<128x256xf32>
    %22 = arith.truncf %21 : vector<128x256xf32> to vector<128x256xbf16>
    %c0_20 = arith.constant 0 : index
    %c0_21 = arith.constant 0 : index
    %c0_22 = arith.constant 0 : index
    %23 = vector.load %arg10[%c0_20, %c0_21, %c0_22] : memref<2x256x256xbf16, #tpu.memory_space<vmem>>, vector<1x256x256xbf16>
    %24 = vector.shape_cast %23 : vector<1x256x256xbf16> to vector<256x256xbf16>
    %cst_23 = arith.constant dense<0.000000e+00> : vector<128x256xf32>
    %25 = tpu.matmul %22, %24, %cst_23 {dimension_numbers = #tpu.dot_dimension_numbers<[1], [0], [0], [1], [0, 0, 1, 1], [], []>} : vector<128x256xbf16>, vector<256x256xbf16>, vector<128x256xf32> -> vector<128x256xf32>
    %c0_24 = arith.constant 0 : index
    %c0_25 = arith.constant 0 : index
    %c0_26 = arith.constant 0 : index
    %26 = vector.load %arg11[%c0_24, %c0_25, %c0_26] : memref<2x1x256xf32, #tpu.memory_space<vmem>>, vector<1x1x256xf32>
    %27 = vector.shape_cast %26 : vector<1x1x256xf32> to vector<1x256xf32>
    %28 = vector.broadcast %27 : vector<1x256xf32> to vector<128x256xf32>
    %29 = arith.addf %25, %28 : vector<128x256xf32>
    %c0_27 = arith.constant 0 : index
    %c0_28 = arith.constant 0 : index
    %c0_29 = arith.constant 0 : index
    %30 = vector.load %arg12[%c0_27, %c0_28, %c0_29] : memref<2x1x1xf32, #tpu.memory_space<vmem>>, vector<1x1x1xf32>
    %31 = vector.shape_cast %30 : vector<1x1x1xf32> to vector<1x1xf32>
    %cst_30 = arith.constant 0.000000e+00 : f32
    %32 = vector.broadcast %cst_30 : f32 to vector<128x256xf32>
    %33 = arith.cmpf oge, %29, %32 : vector<128x256xf32>
    %34 = vector.broadcast %31 : vector<1x1xf32> to vector<128x256xf32>
    %35 = arith.mulf %34, %29 : vector<128x256xf32>
    %36 = arith.select %33, %29, %35 : vector<128x256xi1>, vector<128x256xf32>
    %37 = arith.truncf %36 : vector<128x256xf32> to vector<128x256xbf16>
    %c1 = arith.constant 1 : index
    %c0_31 = arith.constant 0 : index
    %c0_32 = arith.constant 0 : index
    %38 = vector.load %arg10[%c1, %c0_31, %c0_32] : memref<2x256x256xbf16, #tpu.memory_space<vmem>>, vector<1x256x256xbf16>
    %39 = vector.shape_cast %38 : vector<1x256x256xbf16> to vector<256x256xbf16>
    %cst_33 = arith.constant dense<0.000000e+00> : vector<128x256xf32>
    %40 = tpu.matmul %37, %39, %cst_33 {dimension_numbers = #tpu.dot_dimension_numbers<[1], [0], [0], [1], [0, 0, 1, 1], [], []>} : vector<128x256xbf16>, vector<256x256xbf16>, vector<128x256xf32> -> vector<128x256xf32>
    %c1_34 = arith.constant 1 : index
    %c0_35 = arith.constant 0 : index
    %c0_36 = arith.constant 0 : index
    %41 = vector.load %arg11[%c1_34, %c0_35, %c0_36] : memref<2x1x256xf32, #tpu.memory_space<vmem>>, vector<1x1x256xf32>
    %42 = vector.shape_cast %41 : vector<1x1x256xf32> to vector<1x256xf32>
    %43 = vector.broadcast %42 : vector<1x256xf32> to vector<128x256xf32>
    %44 = arith.addf %40, %43 : vector<128x256xf32>
    %c1_37 = arith.constant 1 : index
    %c0_38 = arith.constant 0 : index
    %c0_39 = arith.constant 0 : index
    %45 = vector.load %arg12[%c1_37, %c0_38, %c0_39] : memref<2x1x1xf32, #tpu.memory_space<vmem>>, vector<1x1x1xf32>
    %46 = vector.shape_cast %45 : vector<1x1x1xf32> to vector<1x1xf32>
    %cst_40 = arith.constant 0.000000e+00 : f32
    %47 = vector.broadcast %cst_40 : f32 to vector<128x256xf32>
    %48 = arith.cmpf oge, %44, %47 : vector<128x256xf32>
    %49 = vector.broadcast %46 : vector<1x1xf32> to vector<128x256xf32>
    %50 = arith.mulf %49, %44 : vector<128x256xf32>
    %51 = arith.select %48, %44, %50 : vector<128x256xi1>, vector<128x256xf32>
    %c0_41 = arith.constant 0 : index
    %c0_42 = arith.constant 0 : index
    %52 = vector.load %arg13[%c0_41, %c0_42] : memref<1x256xf32, #tpu.memory_space<vmem>>, vector<1x256xf32>
    %53 = vector.broadcast %52 : vector<1x256xf32> to vector<128x256xf32>
    %54 = arith.mulf %51, %53 : vector<128x256xf32>
    %cst_43 = arith.constant dense<0.000000e+00> : vector<128xf32>
    %55 = vector.multi_reduction <add>, %54, %cst_43 [1] : vector<128x256xf32> to vector<128xf32>
    %56 = vector.shape_cast %55 : vector<128xf32> to vector<128x1xf32>
    %c0_44 = arith.constant 0 : index
    %c0_45 = arith.constant 0 : index
    %57 = vector.load %arg14[%c0_44, %c0_45] : memref<1x1xf32, #tpu.memory_space<vmem>>, vector<1x1xf32>
    %58 = vector.broadcast %57 : vector<1x1xf32> to vector<128x1xf32>
    %59 = arith.addf %56, %58 : vector<128x1xf32>
    %60 = arith.negf %59 : vector<128x1xf32>
    %61 = math.exp %60 : vector<128x1xf32>
    %cst_46 = arith.constant 1.000000e+00 : f32
    %62 = vector.broadcast %cst_46 : f32 to vector<128x1xf32>
    %63 = arith.addf %62, %61 : vector<128x1xf32>
    %64 = arith.divf %62, %63 : vector<128x1xf32>
    %c0_47 = arith.constant 0 : index
    %c0_48 = arith.constant 0 : index
    %65 = vector.load %arg15[%c0_47, %c0_48] : memref<128x1xf32, #tpu.memory_space<vmem>>, vector<128x1xf32>
    tpu.vector_store %arg15[%c0_47, %c0_48], %64 {strides = array<i32>} : memref<128x1xf32, #tpu.memory_space<vmem>>, vector<128x1xf32>,
    return
  }
  func.func @transform_0(%arg0: i32) -> (i32, i32) {
    %c0_i32 = arith.constant 0 : i32
    %c0_i32_0 = arith.constant 0 : i32
    return %arg0, %c0_i32 : i32, i32
  }
  func.func @transform_1(%arg0: i32) -> (i32, i32) {
    %c0_i32 = arith.constant 0 : i32
    %c0_i32_0 = arith.constant 0 : i32
    return %arg0, %c0_i32 : i32, i32
  }
  func.func @transform_2(%arg0: i32) -> (i32, i32) {
    %c0_i32 = arith.constant 0 : i32
    %c0_i32_0 = arith.constant 0 : i32
    return %arg0, %c0_i32 : i32, i32
  }
  func.func @transform_3(%arg0: i32) -> (i32, i32) {
    %c0_i32 = arith.constant 0 : i32
    %c0_i32_0 = arith.constant 0 : i32
    return %arg0, %c0_i32 : i32, i32
  }
  func.func @transform_4(%arg0: i32) -> (i32, i32) {
    %c0_i32 = arith.constant 0 : i32
    %c0_i32_0 = arith.constant 0 : i32
    %c0_i32_1 = arith.constant 0 : i32
    return %c0_i32, %c0_i32_0 : i32, i32
  }
  func.func @transform_5(%arg0: i32) -> (i32, i32) {
    %c0_i32 = arith.constant 0 : i32
    %c0_i32_0 = arith.constant 0 : i32
    %c0_i32_1 = arith.constant 0 : i32
    return %c0_i32, %c0_i32_0 : i32, i32
  }
  func.func @transform_6(%arg0: i32) -> (i32, i32) {
    %c0_i32 = arith.constant 0 : i32
    %c0_i32_0 = arith.constant 0 : i32
    %c0_i32_1 = arith.constant 0 : i32
    return %c0_i32, %c0_i32_0 : i32, i32
  }
  func.func @transform_7(%arg0: i32) -> (i32, i32) {
    %c0_i32 = arith.constant 0 : i32
    %c0_i32_0 = arith.constant 0 : i32
    %c0_i32_1 = arith.constant 0 : i32
    return %c0_i32, %c0_i32_0 : i32, i32
  }
  func.func @transform_8(%arg0: i32) -> (i32, i32) {
    %c0_i32 = arith.constant 0 : i32
    %c0_i32_0 = arith.constant 0 : i32
    %c0_i32_1 = arith.constant 0 : i32
    return %c0_i32, %c0_i32_0 : i32, i32
  }
  func.func @transform_9(%arg0: i32) -> (i32, i32, i32) {
    %c0_i32 = arith.constant 0 : i32
    %c0_i32_0 = arith.constant 0 : i32
    %c0_i32_1 = arith.constant 0 : i32
    %c0_i32_2 = arith.constant 0 : i32
    return %c0_i32, %c0_i32_0, %c0_i32_1 : i32, i32, i32
  }
  func.func @transform_10(%arg0: i32) -> (i32, i32, i32) {
    %c0_i32 = arith.constant 0 : i32
    %c0_i32_0 = arith.constant 0 : i32
    %c0_i32_1 = arith.constant 0 : i32
    %c0_i32_2 = arith.constant 0 : i32
    return %c0_i32, %c0_i32_0, %c0_i32_1 : i32, i32, i32
  }
  func.func @transform_11(%arg0: i32) -> (i32, i32, i32) {
    %c0_i32 = arith.constant 0 : i32
    %c0_i32_0 = arith.constant 0 : i32
    %c0_i32_1 = arith.constant 0 : i32
    %c0_i32_2 = arith.constant 0 : i32
    return %c0_i32, %c0_i32_0, %c0_i32_1 : i32, i32, i32
  }
  func.func @transform_12(%arg0: i32) -> (i32, i32) {
    %c0_i32 = arith.constant 0 : i32
    %c0_i32_0 = arith.constant 0 : i32
    %c0_i32_1 = arith.constant 0 : i32
    return %c0_i32, %c0_i32_0 : i32, i32
  }
  func.func @transform_13(%arg0: i32) -> (i32, i32) {
    %c0_i32 = arith.constant 0 : i32
    %c0_i32_0 = arith.constant 0 : i32
    %c0_i32_1 = arith.constant 0 : i32
    return %c0_i32, %c0_i32_0 : i32, i32
  }
  func.func @transform_14(%arg0: i32) -> (i32, i32) {
    %c0_i32 = arith.constant 0 : i32
    %c0_i32_0 = arith.constant 0 : i32
    return %arg0, %c0_i32 : i32, i32
  }
}

</mosaic_0001>

<llo_original>
// kernel: tpu_custom_call.1
$region0: #{tpu_custom_call.1}
  #allocation0 [shape = 'u32[]', space=smem, size = 0x4, offset = 0x4, fixed_abs, tag = 'smem constant byte address 0x4 - core index']
  #allocation1 [shape = 'u32[144,128]{1,0:T(1,128)}', space=vmem, size = 0x12000, scoped, tag = 'internal scratch']
  #allocation2 [shape = 'f32[1,1]{1,0:T(1,128)S(1)}', space=vmem, size = 0x200, scoped, tag = 'scoped memory for tpu_custom_call.1']
  %s0 = inlined_call_operand.vmem [shape: f32[256,64], index: 0, kind: input, shape index: {}]
  %s1 = inlined_call_operand.vmem [shape: f32[256,64], index: 1, kind: input, shape index: {}]
  %s2 = inlined_call_operand.vmem [shape: f32[256,64], index: 2, kind: input, shape index: {}]
  %s3 = inlined_call_operand.vmem [shape: f32[256,64], index: 3, kind: input, shape index: {}]
  %s4 = inlined_call_operand.vmem [shape: bf16[64,128], index: 4, kind: input, shape index: {}]
  %s5 = inlined_call_operand.vmem [shape: bf16[64,128], index: 5, kind: input, shape index: {}]
  %s6 = inlined_call_operand.vmem [shape: bf16[64,128], index: 6, kind: input, shape index: {}]
  %s7 = inlined_call_operand.vmem [shape: bf16[64,128], index: 7, kind: input, shape index: {}]
  %s8 = inlined_call_operand.vmem [shape: f32[1,256], index: 8, kind: input, shape index: {}]
  %s9 = inlined_call_operand.vmem [shape: bf16[2,256,256], index: 9, kind: input, shape index: {}]
  %s10 = inlined_call_operand.vmem [shape: f32[2,1,256], index: 10, kind: input, shape index: {}]
  %s11 = inlined_call_operand.vmem [shape: f32[2,1,1], index: 11, kind: input, shape index: {}]
  %s12 = inlined_call_operand.vmem [shape: f32[1,256], index: 12, kind: input, shape index: {}]
  %s13 = inlined_call_operand.<no memory space> [shape: f32[1,1], index: 13, kind: input, shape index: {}]
  %s14 = inlined_call_operand.vmem [shape: f32[256,1], index: 14, kind: output, shape index: {}]
  %s15 = sld [smem:[#allocation0]]
  $region89: #{tpu_custom_call.1} parent=0
    _
  %s17 = ssub.s32 1, %s15
  %s18 = scalar_select 0, %s17, %s15
  %v19 = vstv %s13
  %20 = vst [vmem:[#allocation2] sm:$0x1] %v19
  loop: start=0, step=1, limit=4
  $region2: #{tpu_custom_call.1} parent=0 // loop_pre_header
    _
  $region3: #{tpu_custom_call.1} parent=0 // loop_header
    %s22 = sphi 0, %s26
    %p23 = scmp.ge.s32.totalorder %s22, 4
    %s32 = sphi 0, %s34
    %s35 = sphi 0, %s32
    %s36 = sphi 0, %s35
    %s52 = sphi 0, %s36
    %s58 = sphi 0, %s60
    %s61 = sphi 0, %s58
    %s62 = sphi 0, %s61
    %s78 = sphi 0, %s62
    %s84 = sphi 0, %s86
    %s87 = sphi 0, %s84
    %s88 = sphi 0, %s87
    %s104 = sphi 0, %s88
    %s110 = sphi 0, %s112
    %s113 = sphi 0, %s110
    %s114 = sphi 0, %s113
    %s130 = sphi 0, %s114
    %s134 = sphi 0, %s134
    %s136 = sphi 0, %s134
    %s137 = sphi 0, %s136
    %s151 = sphi 0, %s137
    %s155 = sphi 0, %s155
    %s157 = sphi 0, %s155
    %s158 = sphi 0, %s157
    %s172 = sphi 0, %s158
    %s176 = sphi 0, %s176
    %s178 = sphi 0, %s176
    %s179 = sphi 0, %s178
    %s193 = sphi 0, %s179
    %s197 = sphi 0, %s197
    %s199 = sphi 0, %s197
    %s200 = sphi 0, %s199
    %s214 = sphi 0, %s200
    %s218 = sphi 0, %s218
    %s220 = sphi 0, %s218
    %s221 = sphi 0, %s220
    %s235 = sphi 0, %s221
    %s239 = sphi 0, %s239
    %s241 = sphi 0, %s239
    %s242 = sphi 0, %s241
    %s256 = sphi 0, %s242
    %s260 = sphi 0, %s260
    %s262 = sphi 0, %s260
    %s263 = sphi 0, %s262
    %s277 = sphi 0, %s263
    %s281 = sphi 0, %s281
    %s283 = sphi 0, %s281
    %s284 = sphi 0, %s283
    %s298 = sphi 0, %s284
    %s302 = sphi 0, %s302
    %s304 = sphi 0, %s302
    %s305 = sphi 0, %s304
    %s319 = sphi 0, %s305
    %s323 = sphi 0, %s323
    %s325 = sphi 0, %s323
    %s326 = sphi 0, %s325
    %s340 = sphi 0, %s326
    %s346 = sphi 0, %s348
    %s349 = sphi 0, %s346
    %s350 = sphi 0, %s349
    %s366 = sphi 0, %s350
  $region4: #{tpu_custom_call.1} parent=0 // loop_header_branch
    %25 = sbr.rel (%p23) target = $region8
  $region5: #{tpu_custom_call.1} parent=0 // loop_body
    %s27 = ssub.s32 %s22, 1
    %s28 = ssub.s32 %s22, 2
    %s29 = sadd.s32 %s22, 1
    %s30 = ssub.s32 %s22, %s29
    %p31 = scmp.eq.s32.totalorder %s30, 0
    %s33 = sadd.s32 %s32, 1
    %s34 = scalar_select %p31, %s32, %s33
    %p37 = pneg %p31
    %p38 = scmp.eq.s32.totalorder %s22, 1
    %p39 = por %p37, %p38
    %p40 = scmp.ne.s32.totalorder %s32, %s35
    %p41 = scmp.eq.s32.totalorder %s22, 0
    %p42 = por %p40, %p41
    %p43 = scmp.ne.s32.totalorder %s32, %s35
    %p44 = scmp.eq.s32.totalorder %s27, 1
    %p45 = por %p43, %p44
    %p46 = scmp.ne.s32.totalorder %s35, %s36
    %p47 = scmp.eq.s32.totalorder %s27, 0
    %p48 = por %p46, %p47
    %p49 = scmp.ne.s32.totalorder %s35, %s36
    %p50 = scmp.eq.s32.totalorder %s28, 1
    %p51 = por %p49, %p50
    %p53 = scmp.ne.s32.totalorder %s36, %s52
    %p54 = scmp.eq.s32.totalorder %s28, 0
    %p55 = por %p53, %p54
    %s56 = ssub.s32 %s22, %s29
    %p57 = scmp.eq.s32.totalorder %s56, 0
    %s59 = sadd.s32 %s58, 1
    %s60 = scalar_select %p57, %s58, %s59
    %p63 = pneg %p57
    %p64 = scmp.eq.s32.totalorder %s22, 1
    %p65 = por %p63, %p64
    %p66 = scmp.ne.s32.totalorder %s58, %s61
    %p67 = scmp.eq.s32.totalorder %s22, 0
    %p68 = por %p66, %p67
    %p69 = scmp.ne.s32.totalorder %s58, %s61
    %p70 = scmp.eq.s32.totalorder %s27, 1
    %p71 = por %p69, %p70
    %p72 = scmp.ne.s32.totalorder %s61, %s62
    %p73 = scmp.eq.s32.totalorder %s27, 0
    %p74 = por %p72, %p73
    %p75 = scmp.ne.s32.totalorder %s61, %s62
    %p76 = scmp.eq.s32.totalorder %s28, 1
    %p77 = por %p75, %p76
    %p79 = scmp.ne.s32.totalorder %s62, %s78
    %p80 = scmp.eq.s32.totalorder %s28, 0
    %p81 = por %p79, %p80
    %s82 = ssub.s32 %s22, %s29
    %p83 = scmp.eq.s32.totalorder %s82, 0
    %s85 = sadd.s32 %s84, 1
    %s86 = scalar_select %p83, %s84, %s85
    %p89 = pneg %p83
    %p90 = scmp.eq.s32.totalorder %s22, 1
    %p91 = por %p89, %p90
    %p92 = scmp.ne.s32.totalorder %s84, %s87
    %p93 = scmp.eq.s32.totalorder %s22, 0
    %p94 = por %p92, %p93
    %p95 = scmp.ne.s32.totalorder %s84, %s87
    %p96 = scmp.eq.s32.totalorder %s27, 1
    %p97 = por %p95, %p96
    %p98 = scmp.ne.s32.totalorder %s87, %s88
    %p99 = scmp.eq.s32.totalorder %s27, 0
    %p100 = por %p98, %p99
    %p101 = scmp.ne.s32.totalorder %s87, %s88
    %p102 = scmp.eq.s32.totalorder %s28, 1
    %p103 = por %p101, %p102
    %p105 = scmp.ne.s32.totalorder %s88, %s104
    %p106 = scmp.eq.s32.totalorder %s28, 0
    %p107 = por %p105, %p106
    %s108 = ssub.s32 %s22, %s29
    %p109 = scmp.eq.s32.totalorder %s108, 0
    %s111 = sadd.s32 %s110, 1
    %s112 = scalar_select %p109, %s110, %s111
    %p115 = pneg %p109
    %p116 = scmp.eq.s32.totalorder %s22, 1
    %p117 = por %p115, %p116
    %p118 = scmp.ne.s32.totalorder %s110, %s113
    %p119 = scmp.eq.s32.totalorder %s22, 0
    %p120 = por %p118, %p119
    %p121 = scmp.ne.s32.totalorder %s110, %s113
    %p122 = scmp.eq.s32.totalorder %s27, 1
    %p123 = por %p121, %p122
    %p124 = scmp.ne.s32.totalorder %s113, %s114
    %p125 = scmp.eq.s32.totalorder %s27, 0
    %p126 = por %p124, %p125
    %p127 = scmp.ne.s32.totalorder %s113, %s114
    %p128 = scmp.eq.s32.totalorder %s28, 1
    %p129 = por %p127, %p128
    %p131 = scmp.ne.s32.totalorder %s114, %s130
    %p132 = scmp.eq.s32.totalorder %s28, 0
    %p133 = por %p131, %p132
    %s135 = sadd.s32 %s134, 1
    %p138 = scmp.eq.s32.totalorder %s22, 1
    %p139 = scmp.ne.s32.totalorder %s134, %s136
    %p140 = scmp.eq.s32.totalorder %s22, 0
    %p141 = por %p139, %p140
    %p142 = scmp.ne.s32.totalorder %s134, %s136
    %p143 = scmp.eq.s32.totalorder %s27, 1
    %p144 = por %p142, %p143
    %p145 = scmp.ne.s32.totalorder %s136, %s137
    %p146 = scmp.eq.s32.totalorder %s27, 0
    %p147 = por %p145, %p146
    %p148 = scmp.ne.s32.totalorder %s136, %s137
    %p149 = scmp.eq.s32.totalorder %s28, 1
    %p150 = por %p148, %p149
    %p152 = scmp.ne.s32.totalorder %s137, %s151
    %p153 = scmp.eq.s32.totalorder %s28, 0
    %p154 = por %p152, %p153
    %s156 = sadd.s32 %s155, 1
    %p159 = scmp.eq.s32.totalorder %s22, 1
    %p160 = scmp.ne.s32.totalorder %s155, %s157
    %p161 = scmp.eq.s32.totalorder %s22, 0
    %p162 = por %p160, %p161
    %p163 = scmp.ne.s32.totalorder %s155, %s157
    %p164 = scmp.eq.s32.totalorder %s27, 1
    %p165 = por %p163, %p164
    %p166 = scmp.ne.s32.totalorder %s157, %s158
    %p167 = scmp.eq.s32.totalorder %s27, 0
    %p168 = por %p166, %p167
    %p169 = scmp.ne.s32.totalorder %s157, %s158
    %p170 = scmp.eq.s32.totalorder %s28, 1
    %p171 = por %p169, %p170
    %p173 = scmp.ne.s32.totalorder %s158, %s172
    %p174 = scmp.eq.s32.totalorder %s28, 0
    %p175 = por %p173, %p174
    %s177 = sadd.s32 %s176, 1
    %p180 = scmp.eq.s32.totalorder %s22, 1
    %p181 = scmp.ne.s32.totalorder %s176, %s178
    %p182 = scmp.eq.s32.totalorder %s22, 0
    %p183 = por %p181, %p182
    %p184 = scmp.ne.s32.totalorder %s176, %s178
    %p185 = scmp.eq.s32.totalorder %s27, 1
    %p186 = por %p184, %p185
    %p187 = scmp.ne.s32.totalorder %s178, %s179
    %p188 = scmp.eq.s32.totalorder %s27, 0
    %p189 = por %p187, %p188
    %p190 = scmp.ne.s32.totalorder %s178, %s179
    %p191 = scmp.eq.s32.totalorder %s28, 1
    %p192 = por %p190, %p191
    %p194 = scmp.ne.s32.totalorder %s179, %s193
    %p195 = scmp.eq.s32.totalorder %s28, 0
    %p196 = por %p194, %p195
    %s198 = sadd.s32 %s197, 1
    %p201 = scmp.eq.s32.totalorder %s22, 1
    %p202 = scmp.ne.s32.totalorder %s197, %s199
    %p203 = scmp.eq.s32.totalorder %s22, 0
    %p204 = por %p202, %p203
    %p205 = scmp.ne.s32.totalorder %s197, %s199
    %p206 = scmp.eq.s32.totalorder %s27, 1
    %p207 = por %p205, %p206
    %p208 = scmp.ne.s32.totalorder %s199, %s200
    %p209 = scmp.eq.s32.totalorder %s27, 0
    %p210 = por %p208, %p209
    %p211 = scmp.ne.s32.totalorder %s199, %s200
    %p212 = scmp.eq.s32.totalorder %s28, 1
    %p213 = por %p211, %p212
    %p215 = scmp.ne.s32.totalorder %s200, %s214
    %p216 = scmp.eq.s32.totalorder %s28, 0
    %p217 = por %p215, %p216
    %s219 = sadd.s32 %s218, 1
    %p222 = scmp.eq.s32.totalorder %s22, 1
    %p223 = scmp.ne.s32.totalorder %s218, %s220
    %p224 = scmp.eq.s32.totalorder %s22, 0
    %p225 = por %p223, %p224
    %p226 = scmp.ne.s32.totalorder %s218, %s220
    %p227 = scmp.eq.s32.totalorder %s27, 1
    %p228 = por %p226, %p227
    %p229 = scmp.ne.s32.totalorder %s220, %s221
    %p230 = scmp.eq.s32.totalorder %s27, 0
    %p231 = por %p229, %p230
    %p232 = scmp.ne.s32.totalorder %s220, %s221
    %p233 = scmp.eq.s32.totalorder %s28, 1
    %p234 = por %p232, %p233
    %p236 = scmp.ne.s32.totalorder %s221, %s235
    %p237 = scmp.eq.s32.totalorder %s28, 0
    %p238 = por %p236, %p237
    %s240 = sadd.s32 %s239, 1
    %p243 = scmp.eq.s32.totalorder %s22, 1
    %p244 = scmp.ne.s32.totalorder %s239, %s241
    %p245 = scmp.eq.s32.totalorder %s22, 0
    %p246 = por %p244, %p245
    %p247 = scmp.ne.s32.totalorder %s239, %s241
    %p248 = scmp.eq.s32.totalorder %s27, 1
    %p249 = por %p247, %p248
    %p250 = scmp.ne.s32.totalorder %s241, %s242
    %p251 = scmp.eq.s32.totalorder %s27, 0
    %p252 = por %p250, %p251
    %p253 = scmp.ne.s32.totalorder %s241, %s242
    %p254 = scmp.eq.s32.totalorder %s28, 1
    %p255 = por %p253, %p254
    %p257 = scmp.ne.s32.totalorder %s242, %s256
    %p258 = scmp.eq.s32.totalorder %s28, 0
    %p259 = por %p257, %p258
    %s261 = sadd.s32 %s260, 1
    %p264 = scmp.eq.s32.totalorder %s22, 1
    %p265 = scmp.ne.s32.totalorder %s260, %s262
    %p266 = scmp.eq.s32.totalorder %s22, 0
    %p267 = por %p265, %p266
    %p268 = scmp.ne.s32.totalorder %s260, %s262
    %p269 = scmp.eq.s32.totalorder %s27, 1
    %p270 = por %p268, %p269
    %p271 = scmp.ne.s32.totalorder %s262, %s263
    %p272 = scmp.eq.s32.totalorder %s27, 0
    %p273 = por %p271, %p272
    %p274 = scmp.ne.s32.totalorder %s262, %s263
    %p275 = scmp.eq.s32.totalorder %s28, 1
    %p276 = por %p274, %p275
    %p278 = scmp.ne.s32.totalorder %s263, %s277
    %p279 = scmp.eq.s32.totalorder %s28, 0
    %p280 = por %p278, %p279
    %s282 = sadd.s32 %s281, 1
    %p285 = scmp.eq.s32.totalorder %s22, 1
    %p286 = scmp.ne.s32.totalorder %s281, %s283
    %p287 = scmp.eq.s32.totalorder %s22, 0
    %p288 = por %p286, %p287
    %p289 = scmp.ne.s32.totalorder %s281, %s283
    %p290 = scmp.eq.s32.totalorder %s27, 1
    %p291 = por %p289, %p290
    %p292 = scmp.ne.s32.totalorder %s283, %s284
    %p293 = scmp.eq.s32.totalorder %s27, 0
    %p294 = por %p292, %p293
    %p295 = scmp.ne.s32.totalorder %s283, %s284
    %p296 = scmp.eq.s32.totalorder %s28, 1
    %p297 = por %p295, %p296
    %p299 = scmp.ne.s32.totalorder %s284, %s298
    %p300 = scmp.eq.s32.totalorder %s28, 0
    %p301 = por %p299, %p300
    %s303 = sadd.s32 %s302, 1
    %p306 = scmp.eq.s32.totalorder %s22, 1
    %p307 = scmp.ne.s32.totalorder %s302, %s304
    %p308 = scmp.eq.s32.totalorder %s22, 0
    %p309 = por %p307, %p308
    %p310 = scmp.ne.s32.totalorder %s302, %s304
    %p311 = scmp.eq.s32.totalorder %s27, 1
    %p312 = por %p310, %p311
    %p313 = scmp.ne.s32.totalorder %s304, %s305
    %p314 = scmp.eq.s32.totalorder %s27, 0
    %p315 = por %p313, %p314
    %p316 = scmp.ne.s32.totalorder %s304, %s305
    %p317 = scmp.eq.s32.totalorder %s28, 1
    %p318 = por %p316, %p317
    %p320 = scmp.ne.s32.totalorder %s305, %s319
    %p321 = scmp.eq.s32.totalorder %s28, 0
    %p322 = por %p320, %p321
    %s324 = sadd.s32 %s323, 1
    %p327 = scmp.eq.s32.totalorder %s22, 1
    %p328 = scmp.ne.s32.totalorder %s323, %s325
    %p329 = scmp.eq.s32.totalorder %s22, 0
    %p330 = por %p328, %p329
    %p331 = scmp.ne.s32.totalorder %s323, %s325
    %p332 = scmp.eq.s32.totalorder %s27, 1
    %p333 = por %p331, %p332
    %p334 = scmp.ne.s32.totalorder %s325, %s326
    %p335 = scmp.eq.s32.totalorder %s27, 0
    %p336 = por %p334, %p335
    %p337 = scmp.ne.s32.totalorder %s325, %s326
    %p338 = scmp.eq.s32.totalorder %s28, 1
    %p339 = por %p337, %p338
    %p341 = scmp.ne.s32.totalorder %s326, %s340
    %p342 = scmp.eq.s32.totalorder %s28, 0
    %p343 = por %p341, %p342
    %s344 = ssub.s32 %s22, %s29
    %p345 = scmp.eq.s32.totalorder %s344, 0
    %s347 = sadd.s32 %s346, 1
    %s348 = scalar_select %p345, %s346, %s347
    %p351 = pneg %p345
    %p352 = scmp.eq.s32.totalorder %s22, 1
    %p353 = por %p351, %p352
    %p354 = scmp.ne.s32.totalorder %s346, %s349
    %p355 = scmp.eq.s32.totalorder %s22, 0
    %p356 = por %p354, %p355
    %p357 = scmp.ne.s32.totalorder %s346, %s349
    %p358 = scmp.eq.s32.totalorder %s27, 1
    %p359 = por %p357, %p358
    %p360 = scmp.ne.s32.totalorder %s349, %s350
    %p361 = scmp.eq.s32.totalorder %s27, 0
    %p362 = por %p360, %p361
    %p363 = scmp.ne.s32.totalorder %s349, %s350
    %p364 = scmp.eq.s32.totalorder %s28, 1
    %p365 = por %p363, %p364
    %p367 = scmp.ne.s32.totalorder %s350, %s366
    %p368 = scmp.eq.s32.totalorder %s28, 0
    %p369 = por %p367, %p368
    %p370 = scmp.le.s32.totalorder 1, %s22
    %p371 = scmp.lt.s32.totalorder %s22, 3
    %p372 = pnand %p370, %p371
    %p373 = pneg %p372
    // Predicated region
    $region9: #{tpu_custom_call.1} parent=5 // pred_check
      _
    $region10: #{tpu_custom_call.1} parent=5 // pred_check_branch
      %375 = sbr.rel (%p372) target = $region12
    $region11: #{tpu_custom_call.1} parent=5 // pred_region
      %s376 = ssub.s32 %s22, 1
      // Predicated region
      $region13: #{tpu_custom_call.1} parent=11 // pred_check
        %p377 = pneg %p147
      $region14: #{tpu_custom_call.1} parent=11 // pred_check_branch
        %379 = sbr.rel (%p377) target = $region16
      $region15: #{tpu_custom_call.1} parent=11 // pred_region
        _
      $region16: #{tpu_custom_call.1} parent=11 // pred_fallthru
        _
      // Predicated region
      $region17: #{tpu_custom_call.1} parent=11 // pred_check
        %p380 = pneg %p168
      $region18: #{tpu_custom_call.1} parent=11 // pred_check_branch
        %382 = sbr.rel (%p380) target = $region20
      $region19: #{tpu_custom_call.1} parent=11 // pred_region
        _
      $region20: #{tpu_custom_call.1} parent=11 // pred_fallthru
        _
      // Predicated region
      $region21: #{tpu_custom_call.1} parent=11 // pred_check
        %p383 = pneg %p189
      $region22: #{tpu_custom_call.1} parent=11 // pred_check_branch
        %385 = sbr.rel (%p383) target = $region24
      $region23: #{tpu_custom_call.1} parent=11 // pred_region
        _
      $region24: #{tpu_custom_call.1} parent=11 // pred_fallthru
        _
      // Predicated region
      $region25: #{tpu_custom_call.1} parent=11 // pred_check
        %p386 = pneg %p210
      $region26: #{tpu_custom_call.1} parent=11 // pred_check_branch
        %388 = sbr.rel (%p386) target = $region28
      $region27: #{tpu_custom_call.1} parent=11 // pred_region
        _
      $region28: #{tpu_custom_call.1} parent=11 // pred_fallthru
        _
      // Predicated region
      $region29: #{tpu_custom_call.1} parent=11 // pred_check
        %p389 = pneg %p231
      $region30: #{tpu_custom_call.1} parent=11 // pred_check_branch
        %391 = sbr.rel (%p389) target = $region32
      $region31: #{tpu_custom_call.1} parent=11 // pred_region
        _
      $region32: #{tpu_custom_call.1} parent=11 // pred_fallthru
        _
      // Predicated region
      $region33: #{tpu_custom_call.1} parent=11 // pred_check
        %p392 = pneg %p252
      $region34: #{tpu_custom_call.1} parent=11 // pred_check_branch
        %394 = sbr.rel (%p392) target = $region36
      $region35: #{tpu_custom_call.1} parent=11 // pred_region
        _
      $region36: #{tpu_custom_call.1} parent=11 // pred_fallthru
        _
      // Predicated region
      $region37: #{tpu_custom_call.1} parent=11 // pred_check
        %p395 = pneg %p273
      $region38: #{tpu_custom_call.1} parent=11 // pred_check_branch
        %397 = sbr.rel (%p395) target = $region40
      $region39: #{tpu_custom_call.1} parent=11 // pred_region
        _
      $region40: #{tpu_custom_call.1} parent=11 // pred_fallthru
        _
      // Predicated region
      $region41: #{tpu_custom_call.1} parent=11 // pred_check
        %p398 = pneg %p294
      $region42: #{tpu_custom_call.1} parent=11 // pred_check_branch
        %400 = sbr.rel (%p398) target = $region44
      $region43: #{tpu_custom_call.1} parent=11 // pred_region
        _
      $region44: #{tpu_custom_call.1} parent=11 // pred_fallthru
        _
      // Predicated region
      $region45: #{tpu_custom_call.1} parent=11 // pred_check
        %p401 = pneg %p315
      $region46: #{tpu_custom_call.1} parent=11 // pred_check_branch
        %403 = sbr.rel (%p401) target = $region48
      $region47: #{tpu_custom_call.1} parent=11 // pred_region
        _
      $region48: #{tpu_custom_call.1} parent=11 // pred_fallthru
        _
      // Predicated region
      $region49: #{tpu_custom_call.1} parent=11 // pred_check
        %p404 = pneg %p336
      $region50: #{tpu_custom_call.1} parent=11 // pred_check_branch
        %406 = sbr.rel (%p404) target = $region52
      $region51: #{tpu_custom_call.1} parent=11 // pred_region
        _
      $region52: #{tpu_custom_call.1} parent=11 // pred_fallthru
        _
    $region12: #{tpu_custom_call.1} parent=5 // pred_fallthru
      _
    %p407 = scmp.lt.s32.totalorder %s22, 2
    // Predicated region
    $region53: #{tpu_custom_call.1} parent=5 // pred_check
      %p408 = pneg %p407
    $region54: #{tpu_custom_call.1} parent=5 // pred_check_branch
      %410 = sbr.rel (%p408) target = $region56
    $region55: #{tpu_custom_call.1} parent=5 // pred_region
      // Predicated region
      $region57: #{tpu_custom_call.1} parent=55 // pred_check
        %p411 = pneg %p42
      $region58: #{tpu_custom_call.1} parent=55 // pred_check_branch
        %413 = sbr.rel (%p411) target = $region60
      $region59: #{tpu_custom_call.1} parent=55 // pred_region
        %s414 = smul.u32 16, %s22
        %p415 = scmp.lt.s32.totalorder %s414, 31
        %s416 = scalar_select %p415, %s414, 31
        %s417 = smul.addr %s416, 8
        %s418 = scalar_lea.vmem %s0, %s417
        %s419 = smul.u32 16, %s22
      $region60: #{tpu_custom_call.1} parent=55 // pred_fallthru
        _
      // Predicated region
      $region61: #{tpu_custom_call.1} parent=55 // pred_check
        %p420 = pneg %p68
      $region62: #{tpu_custom_call.1} parent=55 // pred_check_branch
        %422 = sbr.rel (%p420) target = $region64
      $region63: #{tpu_custom_call.1} parent=55 // pred_region
        %s423 = smul.u32 16, %s22
        %p424 = scmp.lt.s32.totalorder %s423, 31
        %s425 = scalar_select %p424, %s423, 31
        %s426 = smul.addr %s425, 8
        %s427 = scalar_lea.vmem %s1, %s426
        %s428 = smul.u32 16, %s22
      $region64: #{tpu_custom_call.1} parent=55 // pred_fallthru
        _
      // Predicated region
      $region65: #{tpu_custom_call.1} parent=55 // pred_check
        %p429 = pneg %p94
      $region66: #{tpu_custom_call.1} parent=55 // pred_check_branch
        %431 = sbr.rel (%p429) target = $region68
      $region67: #{tpu_custom_call.1} parent=55 // pred_region
        %s432 = smul.u32 16, %s22
        %p433 = scmp.lt.s32.totalorder %s432, 31
        %s434 = scalar_select %p433, %s432, 31
        %s435 = smul.addr %s434, 8
        %s436 = scalar_lea.vmem %s2, %s435
        %s437 = smul.u32 16, %s22
      $region68: #{tpu_custom_call.1} parent=55 // pred_fallthru
        _
      // Predicated region
      $region69: #{tpu_custom_call.1} parent=55 // pred_check
        %p438 = pneg %p120
      $region70: #{tpu_custom_call.1} parent=55 // pred_check_branch
        %440 = sbr.rel (%p438) target = $region72
      $region71: #{tpu_custom_call.1} parent=55 // pred_region
        %s441 = smul.u32 16, %s22
        %p442 = scmp.lt.s32.totalorder %s441, 31
        %s443 = scalar_select %p442, %s441, 31
        %s444 = smul.addr %s443, 8
        %s445 = scalar_lea.vmem %s3, %s444
        %s446 = smul.u32 16, %s22
      $region72: #{tpu_custom_call.1} parent=55 // pred_fallthru
        _
    $region56: #{tpu_custom_call.1} parent=5 // pred_fallthru
      _
    %p447 = scmp.le.s32.totalorder 1, %s22
    %p448 = scmp.lt.s32.totalorder %s22, 3
    %p449 = pnand %p447, %p448
    %p450 = pneg %p449
    // Predicated region
    $region73: #{tpu_custom_call.1} parent=5 // pred_check
      _
    $region74: #{tpu_custom_call.1} parent=5 // pred_check_branch
      %452 = sbr.rel (%p449) target = $region76
    $region75: #{tpu_custom_call.1} parent=5 // pred_region
      %s453 = ssub.s32 %s22, 1
      %s454 = smul.u32 16, %s27
      %p455 = scmp.lt.s32.totalorder %s454, 31
      %s456 = scalar_select %p455, %s454, 31
      %s457 = smul.addr %s456, 8
      %s458 = scalar_lea.vmem %s0, %s457
      %p459 = pneg %p48
      %p460 = pneg %p45
      %s461 = smul.u32 16, %s27
      %p462 = scmp.lt.s32.totalorder %s461, 31
      %s463 = scalar_select %p462, %s461, 31
      %s464 = smul.addr %s463, 8
      %s465 = scalar_lea.vmem %s1, %s464
      %p466 = pneg %p74
      %p467 = pneg %p71
      %s468 = smul.u32 16, %s27
      %p469 = scmp.lt.s32.totalorder %s468, 31
      %s470 = scalar_select %p469, %s468, 31
      %s471 = smul.addr %s470, 8
      %s472 = scalar_lea.vmem %s2, %s471
      %p473 = pneg %p100
      %p474 = pneg %p97
      %s475 = smul.u32 16, %s27
      %p476 = scmp.lt.s32.totalorder %s475, 31
      %s477 = scalar_select %p476, %s475, 31
      %s478 = smul.addr %s477, 8
      %s479 = scalar_lea.vmem %s3, %s478
      %p480 = pneg %p126
      %p481 = pneg %p123
      %p482 = pneg %p147
      %p483 = pneg %p144
      %p484 = pneg %p168
      %p485 = pneg %p165
      %p486 = pneg %p189
      %p487 = pneg %p186
      %p488 = pneg %p210
      %p489 = pneg %p207
      %p490 = pneg %p231
      %p491 = pneg %p228
      %p492 = pneg %p252
      %p493 = pneg %p249
      %p494 = pneg %p273
      %p495 = pneg %p270
      %p496 = pneg %p294
      %p497 = pneg %p291
      %p498 = pneg %p315
      %p499 = pneg %p312
      %p500 = pneg %p336
      %p501 = pneg %p333
      %p502 = pneg %p362
      %p503 = pneg %p359
      %s504 = smul.u32 16, %s27
      %p505 = scmp.lt.s32.totalorder %s504, 31
      %s506 = scalar_select %p505, %s504, 31
      %s507 = smul.addr %s506, 8
      %s508 = scalar_lea.vmem %s14, %s507
      %s509 = smul.u32 16, %s27
      %p510 = scmp.lt.s32.totalorder %s509, 31
      %s511 = scalar_select %p510, %s509, 31
      %s512 = smul.addr %s511, 8
      %s513 = scalar_lea.vmem %s0, %s512
      %s514 = smul.u32 16, %s27
      %s515 = smul.u32 16, %s27
      %p516 = scmp.lt.s32.totalorder %s515, 31
      %s517 = scalar_select %p516, %s515, 31
      %s518 = smul.addr %s517, 8
      %s519 = scalar_lea.vmem %s1, %s518
      %s520 = smul.u32 16, %s27
      %s521 = smul.u32 16, %s27
      %p522 = scmp.lt.s32.totalorder %s521, 31
      %s523 = scalar_select %p522, %s521, 31
      %s524 = smul.addr %s523, 8
      %s525 = scalar_lea.vmem %s2, %s524
      %s526 = smul.u32 16, %s27
      %s527 = smul.u32 16, %s27
      %p528 = scmp.lt.s32.totalorder %s527, 31
      %s529 = scalar_select %p528, %s527, 31
      %s530 = smul.addr %s529, 8
      %s531 = scalar_lea.vmem %s3, %s530
      %s532 = smul.u32 16, %s27
      %s533 = smul.u32 16, %s27
      %p534 = scmp.lt.s32.totalorder %s533, 31
      %s535 = scalar_select %p534, %s533, 31
      %s536 = smul.addr %s535, 8
      %s537 = scalar_lea.vmem %s14, %s536
      %s538 = smul.u32 16, %s27
      %v540 = vld [vmem:[%s513] sm:$0xff]
      %v541 = vld [vmem:[%s513 + $0x8] sm:$0xff]
      %v542 = vld [vmem:[%s513 + $0x10] sm:$0xff]
      %v543 = vld [vmem:[%s513 + $0x18] sm:$0xff]
      %v544 = vld [vmem:[%s513 + $0x20] sm:$0xff]
      %v545 = vld [vmem:[%s513 + $0x28] sm:$0xff]
      %v546 = vld [vmem:[%s513 + $0x30] sm:$0xff]
      %v547 = vld [vmem:[%s513 + $0x38] sm:$0xff]
      %v548 = vld [vmem:[%s513 + $0x40] sm:$0xff]
      %v549 = vld [vmem:[%s513 + $0x48] sm:$0xff]
      %v550 = vld [vmem:[%s513 + $0x50] sm:$0xff]
      %v551 = vld [vmem:[%s513 + $0x58] sm:$0xff]
      %v552 = vld [vmem:[%s513 + $0x60] sm:$0xff]
      %v553 = vld [vmem:[%s513 + $0x68] sm:$0xff]
      %v554 = vld [vmem:[%s513 + $0x70] sm:$0xff]
      %v555 = vld [vmem:[%s513 + $0x78] sm:$0xff]
      %v556 = vpack.c.bf16 %v541, %v540
      %v557 = vpack.c.bf16 %v543, %v542
      %v558 = vpack.c.bf16 %v545, %v544
      %v559 = vpack.c.bf16 %v547, %v546
      %v560 = vpack.c.bf16 %v549, %v548
      %v561 = vpack.c.bf16 %v551, %v550
      %v562 = vpack.c.bf16 %v553, %v552
      %v563 = vpack.c.bf16 %v555, %v554
      %v564 = vld [vmem:[%s4] sm:$0xf]
      %v565 = vld [vmem:[%s4 + $0x4] sm:$0xf]
      %v566 = vld [vmem:[%s4 + $0x8] sm:$0xf]
      %v567 = vld [vmem:[%s4 + $0xc] sm:$0xf]
      %v568 = vld [vmem:[%s4 + $0x10] sm:$0xf]
      %v569 = vld [vmem:[%s4 + $0x14] sm:$0xf]
      %v570 = vld [vmem:[%s4 + $0x18] sm:$0xf]
      %v571 = vld [vmem:[%s4 + $0x1c] sm:$0xf]
      %v572 = vld [vmem:[%s519] sm:$0xff]
      %v573 = vld [vmem:[%s519 + $0x8] sm:$0xff]
      %v574 = vld [vmem:[%s519 + $0x10] sm:$0xff]
      %v575 = vld [vmem:[%s519 + $0x18] sm:$0xff]
      %v576 = vld [vmem:[%s519 + $0x20] sm:$0xff]
      %v577 = vld [vmem:[%s519 + $0x28] sm:$0xff]
      %v578 = vld [vmem:[%s519 + $0x30] sm:$0xff]
      %v579 = vld [vmem:[%s519 + $0x38] sm:$0xff]
      %v580 = vld [vmem:[%s519 + $0x40] sm:$0xff]
      %v581 = vld [vmem:[%s519 + $0x48] sm:$0xff]
      %v582 = vld [vmem:[%s519 + $0x50] sm:$0xff]
      %v583 = vld [vmem:[%s519 + $0x58] sm:$0xff]
      %v584 = vld [vmem:[%s519 + $0x60] sm:$0xff]
      %v585 = vld [vmem:[%s519 + $0x68] sm:$0xff]
      %v586 = vld [vmem:[%s519 + $0x70] sm:$0xff]
      %v587 = vld [vmem:[%s519 + $0x78] sm:$0xff]
      %v588 = vpack.c.bf16 %v573, %v572
      %v589 = vpack.c.bf16 %v575, %v574
      %v590 = vpack.c.bf16 %v577, %v576
      %v591 = vpack.c.bf16 %v579, %v578
      %v592 = vpack.c.bf16 %v581, %v580
      %v593 = vpack.c.bf16 %v583, %v582
      %v594 = vpack.c.bf16 %v585, %v584
      %v595 = vpack.c.bf16 %v587, %v586
      %v596 = vld [vmem:[%s5] sm:$0xf]
      %v597 = vld [vmem:[%s5 + $0x4] sm:$0xf]
      %v598 = vld [vmem:[%s5 + $0x8] sm:$0xf]
      %v599 = vld [vmem:[%s5 + $0xc] sm:$0xf]
      %v600 = vld [vmem:[%s5 + $0x10] sm:$0xf]
      %v601 = vld [vmem:[%s5 + $0x14] sm:$0xf]
      %v602 = vld [vmem:[%s5 + $0x18] sm:$0xf]
      %v603 = vld [vmem:[%s5 + $0x1c] sm:$0xf]
      %v612 = vunpack.c.l.b16 %v596
      %v613 = vunpack.c.l.b16 %v597
      %v614 = vunpack.c.l.b16 %v598
      %v615 = vunpack.c.l.b16 %v599
      %v616 = vunpack.c.l.b16 %v600
      %v617 = vunpack.c.l.b16 %v601
      %v618 = vunpack.c.l.b16 %v602
      %v619 = vunpack.c.l.b16 %v603
      %v620 = vpack.c.b16 %v613, %v612
      %v621 = vpack.c.b16 %v615, %v614
      %v622 = vpack.c.b16 %v617, %v616
      %v623 = vpack.c.b16 %v619, %v618
      %vm628 = vcmask 523264
      %v630 = vsel %vm628, %v588, 0
      %v633 = vsel %vm628, %v589, 0
      %v636 = vsel %vm628, %v590, 0
      %v639 = vsel %vm628, %v591, 0
      %v642 = vsel %vm628, %v592, 0
      %v645 = vsel %vm628, %v593, 0
      %v648 = vsel %vm628, %v594, 0
      %v651 = vsel %vm628, %v595, 0
      %653 = vmatprep.subr.bf16.mxu0 0
      %654 = vmatpush1.bf16.msra.mxu0 %v620
      %655 = vmatprep.subr.bf16.mxu0 0
      %656 = vmatpush1.bf16.msra.mxu0 %v621
      %657 = vmatprep.subr.bf16.mxu0 0
      %658 = vmatpush1.bf16.msra.mxu0 %v622
      %659 = vmatprep.subr.bf16.mxu0 0
      %660 = vmatpush1.bf16.msra.mxu0 %v623
      %661 = vmatprep.subr.bf16.mxu0 0
      %662 = vmatpush1.bf16.msra.mxu0 0
      %663 = vmatprep.subr.bf16.mxu0 0
      %664 = vmatpush1.bf16.msra.mxu0 0
      %665 = vmatprep.subr.bf16.mxu0 0
      %666 = vmatpush1.bf16.msra.mxu0 0
      %667 = vmatprep.subr.bf16.mxu0 0
      %668 = vmatpush1.bf16.msra.mxu0 0
      %669 = vmatprep.subr.bf16.mxu0 0
      %670 = vmatpush1.bf16.msra.mxu0 0
      %671 = vmatprep.subr.bf16.mxu0 0
      %672 = vmatpush1.bf16.msra.mxu0 0
      %673 = vmatprep.subr.bf16.mxu0 0
      %674 = vmatpush1.bf16.msra.mxu0 0
      %675 = vmatprep.subr.bf16.mxu0 0
      %676 = vmatpush1.bf16.msra.mxu0 0
      %677 = vmatprep.subr.bf16.mxu0 0
      %678 = vmatpush1.bf16.msra.mxu0 0
      %679 = vmatprep.subr.bf16.mxu0 0
      %680 = vmatpush1.bf16.msra.mxu0 0
      %681 = vmatprep.subr.bf16.mxu0 0
      %682 = vmatpush1.bf16.msra.mxu0 0
      %683 = vmatprep.subr.bf16.mxu0 0
      %684 = vmatpush1.bf16.msra.mxu0 0
      %685 = vmatprep.mubr.bf16.mxu0 0
      %686 = vmatmul.mubr.bf16.gmra.mrb[0].mxu0 %v630
      %v687 = vpop.f32.mrb[0].mxu0
      %v688 = vadd.f32 0.0, %v687
      %v689 = vpop.f32.mrb[0].mxu0
      %v690 = vpop.f32.mrb[0].mxu0
      %v691 = vadd.f32 0.0, %v690
      %v692 = vpop.f32.mrb[0].mxu0
      %693 = vmatprep.mubr.bf16.mxu0 0
      %694 = vmatmul.mubr.bf16.gmra.mrb[0].mxu0 %v633
      %v695 = vpop.f32.mrb[0].mxu0
      %v696 = vadd.f32 0.0, %v695
      %v697 = vpop.f32.mrb[0].mxu0
      %v698 = vpop.f32.mrb[0].mxu0
      %v699 = vadd.f32 0.0, %v698
      %v700 = vpop.f32.mrb[0].mxu0
      %701 = vmatprep.mubr.bf16.mxu0 0
      %702 = vmatmul.mubr.bf16.gmra.mrb[0].mxu0 %v636
      %v703 = vpop.f32.mrb[0].mxu0
      %v704 = vadd.f32 0.0, %v703
      %v705 = vpop.f32.mrb[0].mxu0
      %v706 = vpop.f32.mrb[0].mxu0
      %v707 = vadd.f32 0.0, %v706
      %v708 = vpop.f32.mrb[0].mxu0
      %709 = vmatprep.mubr.bf16.mxu0 0
      %710 = vmatmul.mubr.bf16.gmra.mrb[0].mxu0 %v639
      %v711 = vpop.f32.mrb[0].mxu0
      %v712 = vadd.f32 0.0, %v711
      %v713 = vpop.f32.mrb[0].mxu0
      %v714 = vpop.f32.mrb[0].mxu0
      %v715 = vadd.f32 0.0, %v714
      %v716 = vpop.f32.mrb[0].mxu0
      %717 = vmatprep.mubr.bf16.mxu0 0
      %718 = vmatmul.mubr.bf16.gmra.mrb[0].mxu0 %v642
      %v719 = vpop.f32.mrb[0].mxu0
      %v720 = vadd.f32 0.0, %v719
      %v721 = vpop.f32.mrb[0].mxu0
      %v722 = vpop.f32.mrb[0].mxu0
      %v723 = vadd.f32 0.0, %v722
      %v724 = vpop.f32.mrb[0].mxu0
      %725 = vmatprep.mubr.bf16.mxu0 0
      %726 = vmatmul.mubr.bf16.gmra.mrb[0].mxu0 %v645
      %v727 = vpop.f32.mrb[0].mxu0
      %v728 = vadd.f32 0.0, %v727
      %v729 = vpop.f32.mrb[0].mxu0
      %v730 = vpop.f32.mrb[0].mxu0
      %v731 = vadd.f32 0.0, %v730
      %v732 = vpop.f32.mrb[0].mxu0
      %733 = vmatprep.mubr.bf16.mxu0 0
      %734 = vmatmul.mubr.bf16.gmra.mrb[0].mxu0 %v648
      %v735 = vpop.f32.mrb[0].mxu0
      %v736 = vadd.f32 0.0, %v735
      %v737 = vpop.f32.mrb[0].mxu0
      %v738 = vpop.f32.mrb[0].mxu0
      %v739 = vadd.f32 0.0, %v738
      %v740 = vpop.f32.mrb[0].mxu0
      %741 = vmatprep.mubr.bf16.mxu0 0
      %742 = vmatmul.mubr.bf16.gmra.mrb[0].mxu0 %v651
      %v743 = vpop.f32.mrb[0].mxu0
      %v744 = vadd.f32 0.0, %v743
      %v745 = vpop.f32.mrb[0].mxu0
      %v746 = vpop.f32.mrb[0].mxu0
      %v747 = vadd.f32 0.0, %v746
      %v748 = vpop.f32.mrb[0].mxu0
      %749 = vdwg.mxu0
      %v758 = vunpack.c.l.b16 %v564
      %v759 = vunpack.c.l.b16 %v565
      %v760 = vunpack.c.l.b16 %v566
      %v761 = vunpack.c.l.b16 %v567
      %v762 = vunpack.c.l.b16 %v568
      %v763 = vunpack.c.l.b16 %v569
      %v764 = vunpack.c.l.b16 %v570
      %v765 = vunpack.c.l.b16 %v571
      %v766 = vpack.c.b16 %v759, %v758
      %v767 = vpack.c.b16 %v761, %v760
      %v768 = vpack.c.b16 %v763, %v762
      %v769 = vpack.c.b16 %v765, %v764
      %v775 = vsel %vm628, %v556, 0
      %v778 = vsel %vm628, %v557, 0
      %v781 = vsel %vm628, %v558, 0
      %v784 = vsel %vm628, %v559, 0
      %v787 = vsel %vm628, %v560, 0
      %v790 = vsel %vm628, %v561, 0
      %v793 = vsel %vm628, %v562, 0
      %v796 = vsel %vm628, %v563, 0
      %798 = vmatprep.subr.bf16.mxu0 0
      %799 = vmatpush1.bf16.msra.mxu0 %v766
      %800 = vmatprep.subr.bf16.mxu0 0
      %801 = vmatpush1.bf16.msra.mxu0 %v767
      %802 = vmatprep.subr.bf16.mxu0 0
      %803 = vmatpush1.bf16.msra.mxu0 %v768
      %804 = vmatprep.subr.bf16.mxu0 0
      %805 = vmatpush1.bf16.msra.mxu0 %v769
      %806 = vmatprep.subr.bf16.mxu0 0
      %807 = vmatpush1.bf16.msra.mxu0 0
      %808 = vmatprep.subr.bf16.mxu0 0
      %809 = vmatpush1.bf16.msra.mxu0 0
      %810 = vmatprep.subr.bf16.mxu0 0
      %811 = vmatpush1.bf16.msra.mxu0 0
      %812 = vmatprep.subr.bf16.mxu0 0
      %813 = vmatpush1.bf16.msra.mxu0 0
      %814 = vmatprep.subr.bf16.mxu0 0
      %815 = vmatpush1.bf16.msra.mxu0 0
      %816 = vmatprep.subr.bf16.mxu0 0
      %817 = vmatpush1.bf16.msra.mxu0 0
      %818 = vmatprep.subr.bf16.mxu0 0
      %819 = vmatpush1.bf16.msra.mxu0 0
      %820 = vmatprep.subr.bf16.mxu0 0
      %821 = vmatpush1.bf16.msra.mxu0 0
      %822 = vmatprep.subr.bf16.mxu0 0
      %823 = vmatpush1.bf16.msra.mxu0 0
      %824 = vmatprep.subr.bf16.mxu0 0
      %825 = vmatpush1.bf16.msra.mxu0 0
      %826 = vmatprep.subr.bf16.mxu0 0
      %827 = vmatpush1.bf16.msra.mxu0 0
      %828 = vmatprep.subr.bf16.mxu0 0
      %829 = vmatpush1.bf16.msra.mxu0 0
      %830 = vmatprep.mubr.bf16.mxu0 0
      %831 = vmatmul.mubr.bf16.gmra.mrb[0].mxu0 %v775
      %v832 = vpop.f32.mrb[0].mxu0
      %v833 = vadd.f32 %v688, %v832
      %v834 = vpop.f32.mrb[0].mxu0
      %v835 = vpop.f32.mrb[0].mxu0
      %v836 = vadd.f32 %v691, %v835
      %v837 = vpop.f32.mrb[0].mxu0
      %838 = vmatprep.mubr.bf16.mxu0 0
      %839 = vmatmul.mubr.bf16.gmra.mrb[0].mxu0 %v778
      %v840 = vpop.f32.mrb[0].mxu0
      %v841 = vadd.f32 %v696, %v840
      %v842 = vpop.f32.mrb[0].mxu0
      %v843 = vpop.f32.mrb[0].mxu0
      %v844 = vadd.f32 %v699, %v843
      %v845 = vpop.f32.mrb[0].mxu0
      %846 = vmatprep.mubr.bf16.mxu0 0
      %847 = vmatmul.mubr.bf16.gmra.mrb[0].mxu0 %v781
      %v848 = vpop.f32.mrb[0].mxu0
      %v849 = vadd.f32 %v704, %v848
      %v850 = vpop.f32.mrb[0].mxu0
      %v851 = vpop.f32.mrb[0].mxu0
      %v852 = vadd.f32 %v707, %v851
      %v853 = vpop.f32.mrb[0].mxu0
      %854 = vmatprep.mubr.bf16.mxu0 0
      %855 = vmatmul.mubr.bf16.gmra.mrb[0].mxu0 %v784
      %v856 = vpop.f32.mrb[0].mxu0
      %v857 = vadd.f32 %v712, %v856
      %v858 = vpop.f32.mrb[0].mxu0
      %v859 = vpop.f32.mrb[0].mxu0
      %v860 = vadd.f32 %v715, %v859
      %v861 = vpop.f32.mrb[0].mxu0
      %862 = vmatprep.mubr.bf16.mxu0 0
      %863 = vmatmul.mubr.bf16.gmra.mrb[0].mxu0 %v787
      %v864 = vpop.f32.mrb[0].mxu0
      %v865 = vadd.f32 %v720, %v864
      %v866 = vpop.f32.mrb[0].mxu0
      %v867 = vpop.f32.mrb[0].mxu0
      %v868 = vadd.f32 %v723, %v867
      %v869 = vpop.f32.mrb[0].mxu0
      %870 = vmatprep.mubr.bf16.mxu0 0
      %871 = vmatmul.mubr.bf16.gmra.mrb[0].mxu0 %v790
      %v872 = vpop.f32.mrb[0].mxu0
      %v873 = vadd.f32 %v728, %v872
      %v874 = vpop.f32.mrb[0].mxu0
      %v875 = vpop.f32.mrb[0].mxu0
      %v876 = vadd.f32 %v731, %v875
      %v877 = vpop.f32.mrb[0].mxu0
      %878 = vmatprep.mubr.bf16.mxu0 0
      %879 = vmatmul.mubr.bf16.gmra.mrb[0].mxu0 %v793
      %v880 = vpop.f32.mrb[0].mxu0
      %v881 = vadd.f32 %v736, %v880
      %v882 = vpop.f32.mrb[0].mxu0
      %v883 = vpop.f32.mrb[0].mxu0
      %v884 = vadd.f32 %v739, %v883
      %v885 = vpop.f32.mrb[0].mxu0
      %886 = vmatprep.mubr.bf16.mxu0 0
      %887 = vmatmul.mubr.bf16.gmra.mrb[0].mxu0 %v796
      %v888 = vpop.f32.mrb[0].mxu0
      %v889 = vadd.f32 %v744, %v888
      %v890 = vpop.f32.mrb[0].mxu0
      %v891 = vpop.f32.mrb[0].mxu0
      %v892 = vadd.f32 %v747, %v891
      %v893 = vpop.f32.mrb[0].mxu0
      %894 = vdwg.mxu0
      %v895 = vld [vmem:[%s525] sm:$0xff]
      %v896 = vld [vmem:[%s525 + $0x8] sm:$0xff]
      %v897 = vld [vmem:[%s525 + $0x10] sm:$0xff]
      %v898 = vld [vmem:[%s525 + $0x18] sm:$0xff]
      %v899 = vld [vmem:[%s525 + $0x20] sm:$0xff]
      %v900 = vld [vmem:[%s525 + $0x28] sm:$0xff]
      %v901 = vld [vmem:[%s525 + $0x30] sm:$0xff]
      %v902 = vld [vmem:[%s525 + $0x38] sm:$0xff]
      %v903 = vld [vmem:[%s525 + $0x40] sm:$0xff]
      %v904 = vld [vmem:[%s525 + $0x48] sm:$0xff]
      %v905 = vld [vmem:[%s525 + $0x50] sm:$0xff]
      %v906 = vld [vmem:[%s525 + $0x58] sm:$0xff]
      %v907 = vld [vmem:[%s525 + $0x60] sm:$0xff]
      %v908 = vld [vmem:[%s525 + $0x68] sm:$0xff]
      %v909 = vld [vmem:[%s525 + $0x70] sm:$0xff]
      %v910 = vld [vmem:[%s525 + $0x78] sm:$0xff]
      %v911 = vpack.c.bf16 %v896, %v895
      %v912 = vpack.c.bf16 %v898, %v897
      %v913 = vpack.c.bf16 %v900, %v899
      %v914 = vpack.c.bf16 %v902, %v901
      %v915 = vpack.c.bf16 %v904, %v903
      %v916 = vpack.c.bf16 %v906, %v905
      %v917 = vpack.c.bf16 %v908, %v907
      %v918 = vpack.c.bf16 %v910, %v909
      %v919 = vld [vmem:[%s6] sm:$0xf]
      %v920 = vld [vmem:[%s6 + $0x4] sm:$0xf]
      %v921 = vld [vmem:[%s6 + $0x8] sm:$0xf]
      %v922 = vld [vmem:[%s6 + $0xc] sm:$0xf]
      %v923 = vld [vmem:[%s6 + $0x10] sm:$0xf]
      %v924 = vld [vmem:[%s6 + $0x14] sm:$0xf]
      %v925 = vld [vmem:[%s6 + $0x18] sm:$0xf]
      %v926 = vld [vmem:[%s6 + $0x1c] sm:$0xf]
      %v927 = vld [vmem:[%s531] sm:$0xff]
      %v928 = vld [vmem:[%s531 + $0x8] sm:$0xff]
      %v929 = vld [vmem:[%s531 + $0x10] sm:$0xff]
      %v930 = vld [vmem:[%s531 + $0x18] sm:$0xff]
      %v931 = vld [vmem:[%s531 + $0x20] sm:$0xff]
      %v932 = vld [vmem:[%s531 + $0x28] sm:$0xff]
      %v933 = vld [vmem:[%s531 + $0x30] sm:$0xff]
      %v934 = vld [vmem:[%s531 + $0x38] sm:$0xff]
      %v935 = vld [vmem:[%s531 + $0x40] sm:$0xff]
      %v936 = vld [vmem:[%s531 + $0x48] sm:$0xff]
      %v937 = vld [vmem:[%s531 + $0x50] sm:$0xff]
      %v938 = vld [vmem:[%s531 + $0x58] sm:$0xff]
      %v939 = vld [vmem:[%s531 + $0x60] sm:$0xff]
      %v940 = vld [vmem:[%s531 + $0x68] sm:$0xff]
      %v941 = vld [vmem:[%s531 + $0x70] sm:$0xff]
      %v942 = vld [vmem:[%s531 + $0x78] sm:$0xff]
      %v943 = vpack.c.bf16 %v928, %v927
      %v944 = vpack.c.bf16 %v930, %v929
      %v945 = vpack.c.bf16 %v932, %v931
      %v946 = vpack.c.bf16 %v934, %v933
      %v947 = vpack.c.bf16 %v936, %v935
      %v948 = vpack.c.bf16 %v938, %v937
      %v949 = vpack.c.bf16 %v940, %v939
      %v950 = vpack.c.bf16 %v942, %v941
      %v951 = vld [vmem:[%s7] sm:$0xf]
      %v952 = vld [vmem:[%s7 + $0x4] sm:$0xf]
      %v953 = vld [vmem:[%s7 + $0x8] sm:$0xf]
      %v954 = vld [vmem:[%s7 + $0xc] sm:$0xf]
      %v955 = vld [vmem:[%s7 + $0x10] sm:$0xf]
      %v956 = vld [vmem:[%s7 + $0x14] sm:$0xf]
      %v957 = vld [vmem:[%s7 + $0x18] sm:$0xf]
      %v958 = vld [vmem:[%s7 + $0x1c] sm:$0xf]
      %v967 = vunpack.c.l.b16 %v951
      %v968 = vunpack.c.l.b16 %v952
      %v969 = vunpack.c.l.b16 %v953
      %v970 = vunpack.c.l.b16 %v954
      %v971 = vunpack.c.l.b16 %v955
      %v972 = vunpack.c.l.b16 %v956
      %v973 = vunpack.c.l.b16 %v957
      %v974 = vunpack.c.l.b16 %v958
      %v975 = vpack.c.b16 %v968, %v967
      %v976 = vpack.c.b16 %v970, %v969
      %v977 = vpack.c.b16 %v972, %v971
      %v978 = vpack.c.b16 %v974, %v973
      %v984 = vsel %vm628, %v943, 0
      %v987 = vsel %vm628, %v944, 0
      %v990 = vsel %vm628, %v945, 0
      %v993 = vsel %vm628, %v946, 0
      %v996 = vsel %vm628, %v947, 0
      %v999 = vsel %vm628, %v948, 0
      %v1002 = vsel %vm628, %v949, 0
      %v1005 = vsel %vm628, %v950, 0
      %1007 = vmatprep.subr.bf16.mxu0 0
      %1008 = vmatpush1.bf16.msra.mxu0 %v975
      %1009 = vmatprep.subr.bf16.mxu0 0
      %1010 = vmatpush1.bf16.msra.mxu0 %v976
      %1011 = vmatprep.subr.bf16.mxu0 0
      %1012 = vmatpush1.bf16.msra.mxu0 %v977
      %1013 = vmatprep.subr.bf16.mxu0 0
      %1014 = vmatpush1.bf16.msra.mxu0 %v978
      %1015 = vmatprep.subr.bf16.mxu0 0
      %1016 = vmatpush1.bf16.msra.mxu0 0
      %1017 = vmatprep.subr.bf16.mxu0 0
      %1018 = vmatpush1.bf16.msra.mxu0 0
      %1019 = vmatprep.subr.bf16.mxu0 0
      %1020 = vmatpush1.bf16.msra.mxu0 0
      %1021 = vmatprep.subr.bf16.mxu0 0
      %1022 = vmatpush1.bf16.msra.mxu0 0
      %1023 = vmatprep.subr.bf16.mxu0 0
      %1024 = vmatpush1.bf16.msra.mxu0 0
      %1025 = vmatprep.subr.bf16.mxu0 0
      %1026 = vmatpush1.bf16.msra.mxu0 0
      %1027 = vmatprep.subr.bf16.mxu0 0
      %1028 = vmatpush1.bf16.msra.mxu0 0
      %1029 = vmatprep.subr.bf16.mxu0 0
      %1030 = vmatpush1.bf16.msra.mxu0 0
      %1031 = vmatprep.subr.bf16.mxu0 0
      %1032 = vmatpush1.bf16.msra.mxu0 0
      %1033 = vmatprep.subr.bf16.mxu0 0
      %1034 = vmatpush1.bf16.msra.mxu0 0
      %1035 = vmatprep.subr.bf16.mxu0 0
      %1036 = vmatpush1.bf16.msra.mxu0 0
      %1037 = vmatprep.subr.bf16.mxu0 0
      %1038 = vmatpush1.bf16.msra.mxu0 0
      %1039 = vmatprep.mubr.bf16.mxu0 0
      %1040 = vmatmul.mubr.bf16.gmra.mrb[0].mxu0 %v984
      %v1041 = vpop.f32.mrb[0].mxu0
      %v1042 = vadd.f32 0.0, %v1041
      %v1043 = vpop.f32.mrb[0].mxu0
      %v1044 = vpop.f32.mrb[0].mxu0
      %v1045 = vadd.f32 0.0, %v1044
      %v1046 = vpop.f32.mrb[0].mxu0
      %1047 = vmatprep.mubr.bf16.mxu0 0
      %1048 = vmatmul.mubr.bf16.gmra.mrb[0].mxu0 %v987
      %v1049 = vpop.f32.mrb[0].mxu0
      %v1050 = vadd.f32 0.0, %v1049
      %v1051 = vpop.f32.mrb[0].mxu0
      %v1052 = vpop.f32.mrb[0].mxu0
      %v1053 = vadd.f32 0.0, %v1052
      %v1054 = vpop.f32.mrb[0].mxu0
      %1055 = vmatprep.mubr.bf16.mxu0 0
      %1056 = vmatmul.mubr.bf16.gmra.mrb[0].mxu0 %v990
      %v1057 = vpop.f32.mrb[0].mxu0
      %v1058 = vadd.f32 0.0, %v1057
      %v1059 = vpop.f32.mrb[0].mxu0
      %v1060 = vpop.f32.mrb[0].mxu0
      %v1061 = vadd.f32 0.0, %v1060
      %v1062 = vpop.f32.mrb[0].mxu0
      %1063 = vmatprep.mubr.bf16.mxu0 0
      %1064 = vmatmul.mubr.bf16.gmra.mrb[0].mxu0 %v993
      %v1065 = vpop.f32.mrb[0].mxu0
      %v1066 = vadd.f32 0.0, %v1065
      %v1067 = vpop.f32.mrb[0].mxu0
      %v1068 = vpop.f32.mrb[0].mxu0
      %v1069 = vadd.f32 0.0, %v1068
      %v1070 = vpop.f32.mrb[0].mxu0
      %1071 = vmatprep.mubr.bf16.mxu0 0
      %1072 = vmatmul.mubr.bf16.gmra.mrb[0].mxu0 %v996
      %v1073 = vpop.f32.mrb[0].mxu0
      %v1074 = vadd.f32 0.0, %v1073
      %v1075 = vpop.f32.mrb[0].mxu0
      %v1076 = vpop.f32.mrb[0].mxu0
      %v1077 = vadd.f32 0.0, %v1076
      %v1078 = vpop.f32.mrb[0].mxu0
      %1079 = vmatprep.mubr.bf16.mxu0 0
      %1080 = vmatmul.mubr.bf16.gmra.mrb[0].mxu0 %v999
      %v1081 = vpop.f32.mrb[0].mxu0
      %v1082 = vadd.f32 0.0, %v1081
      %v1083 = vpop.f32.mrb[0].mxu0
      %v1084 = vpop.f32.mrb[0].mxu0
      %v1085 = vadd.f32 0.0, %v1084
      %v1086 = vpop.f32.mrb[0].mxu0
      %1087 = vmatprep.mubr.bf16.mxu0 0
      %1088 = vmatmul.mubr.bf16.gmra.mrb[0].mxu0 %v1002
      %v1089 = vpop.f32.mrb[0].mxu0
      %v1090 = vadd.f32 0.0, %v1089
      %v1091 = vpop.f32.mrb[0].mxu0
      %v1092 = vpop.f32.mrb[0].mxu0
      %v1093 = vadd.f32 0.0, %v1092
      %v1094 = vpop.f32.mrb[0].mxu0
      %1095 = vmatprep.mubr.bf16.mxu0 0
      %1096 = vmatmul.mubr.bf16.gmra.mrb[0].mxu0 %v1005
      %v1097 = vpop.f32.mrb[0].mxu0
      %v1098 = vadd.f32 0.0, %v1097
      %v1099 = vpop.f32.mrb[0].mxu0
      %v1100 = vpop.f32.mrb[0].mxu0
      %v1101 = vadd.f32 0.0, %v1100
      %v1102 = vpop.f32.mrb[0].mxu0
      %1103 = vdwg.mxu0
      %v1112 = vunpack.c.l.b16 %v919
      %v1113 = vunpack.c.l.b16 %v920
      %v1114 = vunpack.c.l.b16 %v921
      %v1115 = vunpack.c.l.b16 %v922
      %v1116 = vunpack.c.l.b16 %v923
      %v1117 = vunpack.c.l.b16 %v924
      %v1118 = vunpack.c.l.b16 %v925
      %v1119 = vunpack.c.l.b16 %v926
      %v1120 = vpack.c.b16 %v1113, %v1112
      %v1121 = vpack.c.b16 %v1115, %v1114
      %v1122 = vpack.c.b16 %v1117, %v1116
      %v1123 = vpack.c.b16 %v1119, %v1118
      %v1129 = vsel %vm628, %v911, 0
      %v1132 = vsel %vm628, %v912, 0
      %v1135 = vsel %vm628, %v913, 0
      %v1138 = vsel %vm628, %v914, 0
      %v1141 = vsel %vm628, %v915, 0
      %v1144 = vsel %vm628, %v916, 0
      %v1147 = vsel %vm628, %v917, 0
      %v1150 = vsel %vm628, %v918, 0
      %1152 = vmatprep.subr.bf16.mxu0 0
      %1153 = vmatpush1.bf16.msra.mxu0 %v1120
      %1154 = vmatprep.subr.bf16.mxu0 0
      %1155 = vmatpush1.bf16.msra.mxu0 %v1121
      %1156 = vmatprep.subr.bf16.mxu0 0
      %1157 = vmatpush1.bf16.msra.mxu0 %v1122
      %1158 = vmatprep.subr.bf16.mxu0 0
      %1159 = vmatpush1.bf16.msra.mxu0 %v1123
      %1160 = vmatprep.subr.bf16.mxu0 0
      %1161 = vmatpush1.bf16.msra.mxu0 0
      %1162 = vmatprep.subr.bf16.mxu0 0
      %1163 = vmatpush1.bf16.msra.mxu0 0
      %1164 = vmatprep.subr.bf16.mxu0 0
      %1165 = vmatpush1.bf16.msra.mxu0 0
      %1166 = vmatprep.subr.bf16.mxu0 0
      %1167 = vmatpush1.bf16.msra.mxu0 0
      %1168 = vmatprep.subr.bf16.mxu0 0
      %1169 = vmatpush1.bf16.msra.mxu0 0
      %1170 = vmatprep.subr.bf16.mxu0 0
      %1171 = vmatpush1.bf16.msra.mxu0 0
      %1172 = vmatprep.subr.bf16.mxu0 0
      %1173 = vmatpush1.bf16.msra.mxu0 0
      %1174 = vmatprep.subr.bf16.mxu0 0
      %1175 = vmatpush1.bf16.msra.mxu0 0
      %1176 = vmatprep.subr.bf16.mxu0 0
      %1177 = vmatpush1.bf16.msra.mxu0 0
      %1178 = vmatprep.subr.bf16.mxu0 0
      %1179 = vmatpush1.bf16.msra.mxu0 0
      %1180 = vmatprep.subr.bf16.mxu0 0
      %1181 = vmatpush1.bf16.msra.mxu0 0
      %1182 = vmatprep.subr.bf16.mxu0 0
      %1183 = vmatpush1.bf16.msra.mxu0 0
      %1184 = vmatprep.mubr.bf16.mxu0 0
      %1185 = vmatmul.mubr.bf16.gmra.mrb[0].mxu0 %v1129
      %v1186 = vpop.f32.mrb[0].mxu0
      %v1187 = vadd.f32 %v1042, %v1186
      %v1188 = vpop.f32.mrb[0].mxu0
      %v1189 = vpop.f32.mrb[0].mxu0
      %v1190 = vadd.f32 %v1045, %v1189
      %v1191 = vpop.f32.mrb[0].mxu0
      %1192 = vmatprep.mubr.bf16.mxu0 0
      %1193 = vmatmul.mubr.bf16.gmra.mrb[0].mxu0 %v1132
      %v1194 = vpop.f32.mrb[0].mxu0
      %v1195 = vadd.f32 %v1050, %v1194
      %v1196 = vpop.f32.mrb[0].mxu0
      %v1197 = vpop.f32.mrb[0].mxu0
      %v1198 = vadd.f32 %v1053, %v1197
      %v1199 = vpop.f32.mrb[0].mxu0
      %1200 = vmatprep.mubr.bf16.mxu0 0
      %1201 = vmatmul.mubr.bf16.gmra.mrb[0].mxu0 %v1135
      %v1202 = vpop.f32.mrb[0].mxu0
      %v1203 = vadd.f32 %v1058, %v1202
      %v1204 = vpop.f32.mrb[0].mxu0
      %v1205 = vpop.f32.mrb[0].mxu0
      %v1206 = vadd.f32 %v1061, %v1205
      %v1207 = vpop.f32.mrb[0].mxu0
      %1208 = vmatprep.mubr.bf16.mxu0 0
      %1209 = vmatmul.mubr.bf16.gmra.mrb[0].mxu0 %v1138
      %v1210 = vpop.f32.mrb[0].mxu0
      %v1211 = vadd.f32 %v1066, %v1210
      %v1212 = vpop.f32.mrb[0].mxu0
      %v1213 = vpop.f32.mrb[0].mxu0
      %v1214 = vadd.f32 %v1069, %v1213
      %v1215 = vpop.f32.mrb[0].mxu0
      %1216 = vmatprep.mubr.bf16.mxu0 0
      %1217 = vmatmul.mubr.bf16.gmra.mrb[0].mxu0 %v1141
      %v1218 = vpop.f32.mrb[0].mxu0
      %v1219 = vadd.f32 %v1074, %v1218
      %v1220 = vpop.f32.mrb[0].mxu0
      %v1221 = vpop.f32.mrb[0].mxu0
      %v1222 = vadd.f32 %v1077, %v1221
      %v1223 = vpop.f32.mrb[0].mxu0
      %1224 = vmatprep.mubr.bf16.mxu0 0
      %1225 = vmatmul.mubr.bf16.gmra.mrb[0].mxu0 %v1144
      %v1226 = vpop.f32.mrb[0].mxu0
      %v1227 = vadd.f32 %v1082, %v1226
      %v1228 = vpop.f32.mrb[0].mxu0
      %v1229 = vpop.f32.mrb[0].mxu0
      %v1230 = vadd.f32 %v1085, %v1229
      %v1231 = vpop.f32.mrb[0].mxu0
      %1232 = vmatprep.mubr.bf16.mxu0 0
      %1233 = vmatmul.mubr.bf16.gmra.mrb[0].mxu0 %v1147
      %v1234 = vpop.f32.mrb[0].mxu0
      %v1235 = vadd.f32 %v1090, %v1234
      %v1236 = vpop.f32.mrb[0].mxu0
      %v1237 = vpop.f32.mrb[0].mxu0
      %v1238 = vadd.f32 %v1093, %v1237
      %v1239 = vpop.f32.mrb[0].mxu0
      %1240 = vmatprep.mubr.bf16.mxu0 0
      %1241 = vmatmul.mubr.bf16.gmra.mrb[0].mxu0 %v1150
      %v1242 = vpop.f32.mrb[0].mxu0
      %v1243 = vadd.f32 %v1098, %v1242
      %v1244 = vpop.f32.mrb[0].mxu0
      %v1245 = vpop.f32.mrb[0].mxu0
      %v1246 = vadd.f32 %v1101, %v1245
      %v1247 = vpop.f32.mrb[0].mxu0
      %1248 = vdwg.mxu0
      %v1249 = vld [vmem:[%s8] sm:$0x3]
      %v1251 = vlaneseq
      %v1252 = vshrl.u32 %v1251, 7
      %v1253 = vsub.s32 0, %v1252
      %v1254 = vrot.slane %v1249, %v1253
      %v1255 = vlaneseq
      %v1256 = vshrl.u32 %v1255, 7
      %v1257 = vsub.s32 1, %v1256
      %v1258 = vrot.slane %v1249, %v1257
      %v1261 = vadd.f32 %v833, %v1254
      %v1262 = vadd.f32 %v1187, %v1258
      %v1263 = vadd.f32 %v836, %v1254
      %v1264 = vadd.f32 %v1190, %v1258
      %v1265 = vadd.f32 %v841, %v1254
      %v1266 = vadd.f32 %v1195, %v1258
      %v1267 = vadd.f32 %v844, %v1254
      %v1268 = vadd.f32 %v1198, %v1258
      %v1269 = vadd.f32 %v849, %v1254
      %v1270 = vadd.f32 %v1203, %v1258
      %v1271 = vadd.f32 %v852, %v1254
      %v1272 = vadd.f32 %v1206, %v1258
      %v1273 = vadd.f32 %v857, %v1254
      %v1274 = vadd.f32 %v1211, %v1258
      %v1275 = vadd.f32 %v860, %v1254
      %v1276 = vadd.f32 %v1214, %v1258
      %v1277 = vadd.f32 %v865, %v1254
      %v1278 = vadd.f32 %v1219, %v1258
      %v1279 = vadd.f32 %v868, %v1254
      %v1280 = vadd.f32 %v1222, %v1258
      %v1281 = vadd.f32 %v873, %v1254
      %v1282 = vadd.f32 %v1227, %v1258
      %v1283 = vadd.f32 %v876, %v1254
      %v1284 = vadd.f32 %v1230, %v1258
      %v1285 = vadd.f32 %v881, %v1254
      %v1286 = vadd.f32 %v1235, %v1258
      %v1287 = vadd.f32 %v884, %v1254
      %v1288 = vadd.f32 %v1238, %v1258
      %v1289 = vadd.f32 %v889, %v1254
      %v1290 = vadd.f32 %v1243, %v1258
      %v1291 = vadd.f32 %v892, %v1254
      %v1292 = vadd.f32 %v1246, %v1258
      %v1293 = vpack.c.bf16 %v1263, %v1261
      %v1294 = vpack.c.bf16 %v1264, %v1262
      %v1295 = vpack.c.bf16 %v1267, %v1265
      %v1296 = vpack.c.bf16 %v1268, %v1266
      %v1297 = vpack.c.bf16 %v1271, %v1269
      %v1298 = vpack.c.bf16 %v1272, %v1270
      %v1299 = vpack.c.bf16 %v1275, %v1273
      %v1300 = vpack.c.bf16 %v1276, %v1274
      %v1301 = vpack.c.bf16 %v1279, %v1277
      %v1302 = vpack.c.bf16 %v1280, %v1278
      %v1303 = vpack.c.bf16 %v1283, %v1281
      %v1304 = vpack.c.bf16 %v1284, %v1282
      %v1305 = vpack.c.bf16 %v1287, %v1285
      %v1306 = vpack.c.bf16 %v1288, %v1286
      %v1307 = vpack.c.bf16 %v1291, %v1289
      %v1308 = vpack.c.bf16 %v1292, %v1290
      %v1309 = vld [vmem:[%s9] sm:$0xff]
      %v1310 = vld [vmem:[%s9 + $0x8] sm:$0xff]
      %v1311 = vld [vmem:[%s9 + $0x10] sm:$0xff]
      %v1312 = vld [vmem:[%s9 + $0x18] sm:$0xff]
      %v1313 = vld [vmem:[%s9 + $0x20] sm:$0xff]
      %v1314 = vld [vmem:[%s9 + $0x28] sm:$0xff]
      %v1315 = vld [vmem:[%s9 + $0x30] sm:$0xff]
      %v1316 = vld [vmem:[%s9 + $0x38] sm:$0xff]
      %v1317 = vld [vmem:[%s9 + $0x40] sm:$0xff]
      %v1318 = vld [vmem:[%s9 + $0x48] sm:$0xff]
      %v1319 = vld [vmem:[%s9 + $0x50] sm:$0xff]
      %v1320 = vld [vmem:[%s9 + $0x58] sm:$0xff]
      %v1321 = vld [vmem:[%s9 + $0x60] sm:$0xff]
      %v1322 = vld [vmem:[%s9 + $0x68] sm:$0xff]
      %v1323 = vld [vmem:[%s9 + $0x70] sm:$0xff]
      %v1324 = vld [vmem:[%s9 + $0x78] sm:$0xff]
      %v1325 = vld [vmem:[%s9 + $0x80] sm:$0xff]
      %v1326 = vld [vmem:[%s9 + $0x88] sm:$0xff]
      %v1327 = vld [vmem:[%s9 + $0x90] sm:$0xff]
      %v1328 = vld [vmem:[%s9 + $0x98] sm:$0xff]
      %v1329 = vld [vmem:[%s9 + $0xa0] sm:$0xff]
      %v1330 = vld [vmem:[%s9 + $0xa8] sm:$0xff]
      %v1331 = vld [vmem:[%s9 + $0xb0] sm:$0xff]
      %v1332 = vld [vmem:[%s9 + $0xb8] sm:$0xff]
      %v1333 = vld [vmem:[%s9 + $0xc0] sm:$0xff]
      %v1334 = vld [vmem:[%s9 + $0xc8] sm:$0xff]
      %v1335 = vld [vmem:[%s9 + $0xd0] sm:$0xff]
      %v1336 = vld [vmem:[%s9 + $0xd8] sm:$0xff]
      %v1337 = vld [vmem:[%s9 + $0xe0] sm:$0xff]
      %v1338 = vld [vmem:[%s9 + $0xe8] sm:$0xff]
      %v1339 = vld [vmem:[%s9 + $0xf0] sm:$0xff]
      %v1340 = vld [vmem:[%s9 + $0xf8] sm:$0xff]
      %v1341 = vld [vmem:[%s10] sm:$0x3]
      %v1343 = vlaneseq
      %v1344 = vshrl.u32 %v1343, 7
      %v1345 = vsub.s32 0, %v1344
      %v1346 = vrot.slane %v1341, %v1345
      %v1347 = vlaneseq
      %v1348 = vshrl.u32 %v1347, 7
      %v1349 = vsub.s32 1, %v1348
      %v1350 = vrot.slane %v1341, %v1349
      %v1385 = vunpack.c.l.b16 %v1309
      %v1386 = vunpack.c.h.b16 %v1309
      %v1387 = vunpack.c.l.b16 %v1310
      %v1388 = vunpack.c.h.b16 %v1310
      %v1389 = vunpack.c.l.b16 %v1311
      %v1390 = vunpack.c.h.b16 %v1311
      %v1391 = vunpack.c.l.b16 %v1312
      %v1392 = vunpack.c.h.b16 %v1312
      %v1393 = vunpack.c.l.b16 %v1313
      %v1394 = vunpack.c.h.b16 %v1313
      %v1395 = vunpack.c.l.b16 %v1314
      %v1396 = vunpack.c.h.b16 %v1314
      %v1397 = vunpack.c.l.b16 %v1315
      %v1398 = vunpack.c.h.b16 %v1315
      %v1399 = vunpack.c.l.b16 %v1316
      %v1400 = vunpack.c.h.b16 %v1316
      %v1401 = vunpack.c.l.b16 %v1317
      %v1402 = vunpack.c.h.b16 %v1317
      %v1403 = vunpack.c.l.b16 %v1318
      %v1404 = vunpack.c.h.b16 %v1318
      %v1405 = vunpack.c.l.b16 %v1319
      %v1406 = vunpack.c.h.b16 %v1319
      %v1407 = vunpack.c.l.b16 %v1320
      %v1408 = vunpack.c.h.b16 %v1320
      %v1409 = vunpack.c.l.b16 %v1321
      %v1410 = vunpack.c.h.b16 %v1321
      %v1411 = vunpack.c.l.b16 %v1322
      %v1412 = vunpack.c.h.b16 %v1322
      %v1413 = vunpack.c.l.b16 %v1323
      %v1414 = vunpack.c.h.b16 %v1323
      %v1415 = vunpack.c.l.b16 %v1324
      %v1416 = vunpack.c.h.b16 %v1324
      %v1417 = vunpack.c.l.b16 %v1325
      %v1418 = vunpack.c.h.b16 %v1325
      %v1419 = vunpack.c.l.b16 %v1326
      %v1420 = vunpack.c.h.b16 %v1326
      %v1421 = vunpack.c.l.b16 %v1327
      %v1422 = vunpack.c.h.b16 %v1327
      %v1423 = vunpack.c.l.b16 %v1328
      %v1424 = vunpack.c.h.b16 %v1328
      %v1425 = vunpack.c.l.b16 %v1329
      %v1426 = vunpack.c.h.b16 %v1329
      %v1427 = vunpack.c.l.b16 %v1330
      %v1428 = vunpack.c.h.b16 %v1330
      %v1429 = vunpack.c.l.b16 %v1331
      %v1430 = vunpack.c.h.b16 %v1331
      %v1431 = vunpack.c.l.b16 %v1332
      %v1432 = vunpack.c.h.b16 %v1332
      %v1433 = vunpack.c.l.b16 %v1333
      %v1434 = vunpack.c.h.b16 %v1333
      %v1435 = vunpack.c.l.b16 %v1334
      %v1436 = vunpack.c.h.b16 %v1334
      %v1437 = vunpack.c.l.b16 %v1335
      %v1438 = vunpack.c.h.b16 %v1335
      %v1439 = vunpack.c.l.b16 %v1336
      %v1440 = vunpack.c.h.b16 %v1336
      %v1441 = vunpack.c.l.b16 %v1337
      %v1442 = vunpack.c.h.b16 %v1337
      %v1443 = vunpack.c.l.b16 %v1338
      %v1444 = vunpack.c.h.b16 %v1338
      %v1445 = vunpack.c.l.b16 %v1339
      %v1446 = vunpack.c.h.b16 %v1339
      %v1447 = vunpack.c.l.b16 %v1340
      %v1448 = vunpack.c.h.b16 %v1340
      %v1449 = vpack.c.b16 %v1387, %v1385
      %v1450 = vpack.c.b16 %v1388, %v1386
      %v1451 = vpack.c.b16 %v1391, %v1389
      %v1452 = vpack.c.b16 %v1392, %v1390
      %v1453 = vpack.c.b16 %v1395, %v1393
      %v1454 = vpack.c.b16 %v1396, %v1394
      %v1455 = vpack.c.b16 %v1399, %v1397
      %v1456 = vpack.c.b16 %v1400, %v1398
      %v1457 = vpack.c.b16 %v1403, %v1401
      %v1458 = vpack.c.b16 %v1404, %v1402
      %v1459 = vpack.c.b16 %v1407, %v1405
      %v1460 = vpack.c.b16 %v1408, %v1406
      %v1461 = vpack.c.b16 %v1411, %v1409
      %v1462 = vpack.c.b16 %v1412, %v1410
      %v1463 = vpack.c.b16 %v1415, %v1413
      %v1464 = vpack.c.b16 %v1416, %v1414
      %v1465 = vpack.c.b16 %v1419, %v1417
      %v1466 = vpack.c.b16 %v1420, %v1418
      %v1467 = vpack.c.b16 %v1423, %v1421
      %v1468 = vpack.c.b16 %v1424, %v1422
      %v1469 = vpack.c.b16 %v1427, %v1425
      %v1470 = vpack.c.b16 %v1428, %v1426
      %v1471 = vpack.c.b16 %v1431, %v1429
      %v1472 = vpack.c.b16 %v1432, %v1430
      %v1473 = vpack.c.b16 %v1435, %v1433
      %v1474 = vpack.c.b16 %v1436, %v1434
      %v1475 = vpack.c.b16 %v1439, %v1437
      %v1476 = vpack.c.b16 %v1440, %v1438
      %v1477 = vpack.c.b16 %v1443, %v1441
      %v1478 = vpack.c.b16 %v1444, %v1442
      %v1479 = vpack.c.b16 %v1447, %v1445
      %v1480 = vpack.c.b16 %v1448, %v1446
      %1513 = vmatprep.subr.bf16.mxu0 %v1450
      %1514 = vmatpush1.bf16.msra.mxu0 %v1449
      %1515 = vmatprep.subr.bf16.mxu0 %v1452
      %1516 = vmatpush1.bf16.msra.mxu0 %v1451
      %1517 = vmatprep.subr.bf16.mxu0 %v1454
      %1518 = vmatpush1.bf16.msra.mxu0 %v1453
      %1519 = vmatprep.subr.bf16.mxu0 %v1456
      %1520 = vmatpush1.bf16.msra.mxu0 %v1455
      %1521 = vmatprep.subr.bf16.mxu0 %v1458
      %1522 = vmatpush1.bf16.msra.mxu0 %v1457
      %1523 = vmatprep.subr.bf16.mxu0 %v1460
      %1524 = vmatpush1.bf16.msra.mxu0 %v1459
      %1525 = vmatprep.subr.bf16.mxu0 %v1462
      %1526 = vmatpush1.bf16.msra.mxu0 %v1461
      %1527 = vmatprep.subr.bf16.mxu0 %v1464
      %1528 = vmatpush1.bf16.msra.mxu0 %v1463
      %1529 = vmatprep.subr.bf16.mxu0 %v1466
      %1530 = vmatpush1.bf16.msra.mxu0 %v1465
      %1531 = vmatprep.subr.bf16.mxu0 %v1468
      %1532 = vmatpush1.bf16.msra.mxu0 %v1467
      %1533 = vmatprep.subr.bf16.mxu0 %v1470
      %1534 = vmatpush1.bf16.msra.mxu0 %v1469
      %1535 = vmatprep.subr.bf16.mxu0 %v1472
      %1536 = vmatpush1.bf16.msra.mxu0 %v1471
      %1537 = vmatprep.subr.bf16.mxu0 %v1474
      %1538 = vmatpush1.bf16.msra.mxu0 %v1473
      %1539 = vmatprep.subr.bf16.mxu0 %v1476
      %1540 = vmatpush1.bf16.msra.mxu0 %v1475
      %1541 = vmatprep.subr.bf16.mxu0 %v1478
      %1542 = vmatpush1.bf16.msra.mxu0 %v1477
      %1543 = vmatprep.subr.bf16.mxu0 %v1480
      %1544 = vmatpush1.bf16.msra.mxu0 %v1479
      %1545 = vmatprep.mubr.bf16.mxu0 %v1294
      %1546 = vmatmul.mubr.bf16.gmra.mrb[0].mxu0 %v1293
      %v1547 = vpop.f32.mrb[0].mxu0
      %v1548 = vadd.f32 %v1346, %v1547
      %v1549 = vpop.f32.mrb[0].mxu0
      %v1550 = vadd.f32 %v1350, %v1549
      %v1551 = vpop.f32.mrb[0].mxu0
      %v1552 = vadd.f32 %v1346, %v1551
      %v1553 = vpop.f32.mrb[0].mxu0
      %v1554 = vadd.f32 %v1350, %v1553
      %1555 = vmatprep.mubr.bf16.mxu0 %v1296
      %1556 = vmatmul.mubr.bf16.gmra.mrb[0].mxu0 %v1295
      %v1557 = vpop.f32.mrb[0].mxu0
      %v1558 = vadd.f32 %v1346, %v1557
      %v1559 = vpop.f32.mrb[0].mxu0
      %v1560 = vadd.f32 %v1350, %v1559
      %v1561 = vpop.f32.mrb[0].mxu0
      %v1562 = vadd.f32 %v1346, %v1561
      %v1563 = vpop.f32.mrb[0].mxu0
      %v1564 = vadd.f32 %v1350, %v1563
      %1565 = vmatprep.mubr.bf16.mxu0 %v1298
      %1566 = vmatmul.mubr.bf16.gmra.mrb[0].mxu0 %v1297
      %v1567 = vpop.f32.mrb[0].mxu0
      %v1568 = vadd.f32 %v1346, %v1567
      %v1569 = vpop.f32.mrb[0].mxu0
      %v1570 = vadd.f32 %v1350, %v1569
      %v1571 = vpop.f32.mrb[0].mxu0
      %v1572 = vadd.f32 %v1346, %v1571
      %v1573 = vpop.f32.mrb[0].mxu0
      %v1574 = vadd.f32 %v1350, %v1573
      %1575 = vmatprep.mubr.bf16.mxu0 %v1300
      %1576 = vmatmul.mubr.bf16.gmra.mrb[0].mxu0 %v1299
      %v1577 = vpop.f32.mrb[0].mxu0
      %v1578 = vadd.f32 %v1346, %v1577
      %v1579 = vpop.f32.mrb[0].mxu0
      %v1580 = vadd.f32 %v1350, %v1579
      %v1581 = vpop.f32.mrb[0].mxu0
      %v1582 = vadd.f32 %v1346, %v1581
      %v1583 = vpop.f32.mrb[0].mxu0
      %v1584 = vadd.f32 %v1350, %v1583
      %1585 = vmatprep.mubr.bf16.mxu0 %v1302
      %1586 = vmatmul.mubr.bf16.gmra.mrb[0].mxu0 %v1301
      %v1587 = vpop.f32.mrb[0].mxu0
      %v1588 = vadd.f32 %v1346, %v1587
      %v1589 = vpop.f32.mrb[0].mxu0
      %v1590 = vadd.f32 %v1350, %v1589
      %v1591 = vpop.f32.mrb[0].mxu0
      %v1592 = vadd.f32 %v1346, %v1591
      %v1593 = vpop.f32.mrb[0].mxu0
      %v1594 = vadd.f32 %v1350, %v1593
      %1595 = vmatprep.mubr.bf16.mxu0 %v1304
      %1596 = vmatmul.mubr.bf16.gmra.mrb[0].mxu0 %v1303
      %v1597 = vpop.f32.mrb[0].mxu0
      %v1598 = vadd.f32 %v1346, %v1597
      %v1599 = vpop.f32.mrb[0].mxu0
      %v1600 = vadd.f32 %v1350, %v1599
      %v1601 = vpop.f32.mrb[0].mxu0
      %v1602 = vadd.f32 %v1346, %v1601
      %v1603 = vpop.f32.mrb[0].mxu0
      %v1604 = vadd.f32 %v1350, %v1603
      %1605 = vmatprep.mubr.bf16.mxu0 %v1306
      %1606 = vmatmul.mubr.bf16.gmra.mrb[0].mxu0 %v1305
      %v1607 = vpop.f32.mrb[0].mxu0
      %v1608 = vadd.f32 %v1346, %v1607
      %v1609 = vpop.f32.mrb[0].mxu0
      %v1610 = vadd.f32 %v1350, %v1609
      %v1611 = vpop.f32.mrb[0].mxu0
      %v1612 = vadd.f32 %v1346, %v1611
      %v1613 = vpop.f32.mrb[0].mxu0
      %v1614 = vadd.f32 %v1350, %v1613
      %1615 = vmatprep.mubr.bf16.mxu0 %v1308
      %1616 = vmatmul.mubr.bf16.gmra.mrb[0].mxu0 %v1307
      %v1617 = vpop.f32.mrb[0].mxu0
      %v1618 = vadd.f32 %v1346, %v1617
      %v1619 = vpop.f32.mrb[0].mxu0
      %v1620 = vadd.f32 %v1350, %v1619
      %v1621 = vpop.f32.mrb[0].mxu0
      %v1622 = vadd.f32 %v1346, %v1621
      %v1623 = vpop.f32.mrb[0].mxu0
      %v1624 = vadd.f32 %v1350, %v1623
      %1625 = vdwg.mxu0
      %v1626 = vld [vmem:[%s11] sm:$0x1]
      %vm1627 = vcmp.ge.f32.partialorder %v1548, 0.0
      %vm1628 = vcmp.ge.f32.partialorder %v1550, 0.0
      %vm1629 = vcmp.ge.f32.partialorder %v1552, 0.0
      %vm1630 = vcmp.ge.f32.partialorder %v1554, 0.0
      %vm1631 = vcmp.ge.f32.partialorder %v1558, 0.0
      %vm1632 = vcmp.ge.f32.partialorder %v1560, 0.0
      %vm1633 = vcmp.ge.f32.partialorder %v1562, 0.0
      %vm1634 = vcmp.ge.f32.partialorder %v1564, 0.0
      %vm1635 = vcmp.ge.f32.partialorder %v1568, 0.0
      %vm1636 = vcmp.ge.f32.partialorder %v1570, 0.0
      %vm1637 = vcmp.ge.f32.partialorder %v1572, 0.0
      %vm1638 = vcmp.ge.f32.partialorder %v1574, 0.0
      %vm1639 = vcmp.ge.f32.partialorder %v1578, 0.0
      %vm1640 = vcmp.ge.f32.partialorder %v1580, 0.0
      %vm1641 = vcmp.ge.f32.partialorder %v1582, 0.0
      %vm1642 = vcmp.ge.f32.partialorder %v1584, 0.0
      %vm1643 = vcmp.ge.f32.partialorder %v1588, 0.0
      %vm1644 = vcmp.ge.f32.partialorder %v1590, 0.0
      %vm1645 = vcmp.ge.f32.partialorder %v1592, 0.0
      %vm1646 = vcmp.ge.f32.partialorder %v1594, 0.0
      %vm1647 = vcmp.ge.f32.partialorder %v1598, 0.0
      %vm1648 = vcmp.ge.f32.partialorder %v1600, 0.0
      %vm1649 = vcmp.ge.f32.partialorder %v1602, 0.0
      %vm1650 = vcmp.ge.f32.partialorder %v1604, 0.0
      %vm1651 = vcmp.ge.f32.partialorder %v1608, 0.0
      %vm1652 = vcmp.ge.f32.partialorder %v1610, 0.0
      %vm1653 = vcmp.ge.f32.partialorder %v1612, 0.0
      %vm1654 = vcmp.ge.f32.partialorder %v1614, 0.0
      %vm1655 = vcmp.ge.f32.partialorder %v1618, 0.0
      %vm1656 = vcmp.ge.f32.partialorder %v1620, 0.0
      %vm1657 = vcmp.ge.f32.partialorder %v1622, 0.0
      %vm1658 = vcmp.ge.f32.partialorder %v1624, 0.0
      %v1660 = vlaneseq
      %v1661 = vshrl.u32 %v1660, 7
      %v1662 = vsub.s32 0, %v1661
      %v1663 = vrot.slane %v1626, %v1662
      %1664 = vset.pattern.permute.xlu0 0
      %1665 = vperm.xlu0 %1664, %v1663
      %v1666 = vpop.permute.xlu0 %1665
      %v1668 = vmul.f32 %v1666, %v1548
      %v1669 = vmul.f32 %v1666, %v1550
      %v1670 = vmul.f32 %v1666, %v1552
      %v1671 = vmul.f32 %v1666, %v1554
      %v1672 = vmul.f32 %v1666, %v1558
      %v1673 = vmul.f32 %v1666, %v1560
      %v1674 = vmul.f32 %v1666, %v1562
      %v1675 = vmul.f32 %v1666, %v1564
      %v1676 = vmul.f32 %v1666, %v1568
      %v1677 = vmul.f32 %v1666, %v1570
      %v1678 = vmul.f32 %v1666, %v1572
      %v1679 = vmul.f32 %v1666, %v1574
      %v1680 = vmul.f32 %v1666, %v1578
      %v1681 = vmul.f32 %v1666, %v1580
      %v1682 = vmul.f32 %v1666, %v1582
      %v1683 = vmul.f32 %v1666, %v1584
      %v1684 = vmul.f32 %v1666, %v1588
      %v1685 = vmul.f32 %v1666, %v1590
      %v1686 = vmul.f32 %v1666, %v1592
      %v1687 = vmul.f32 %v1666, %v1594
      %v1688 = vmul.f32 %v1666, %v1598
      %v1689 = vmul.f32 %v1666, %v1600
      %v1690 = vmul.f32 %v1666, %v1602
      %v1691 = vmul.f32 %v1666, %v1604
      %v1692 = vmul.f32 %v1666, %v1608
      %v1693 = vmul.f32 %v1666, %v1610
      %v1694 = vmul.f32 %v1666, %v1612
      %v1695 = vmul.f32 %v1666, %v1614
      %v1696 = vmul.f32 %v1666, %v1618
      %v1697 = vmul.f32 %v1666, %v1620
      %v1698 = vmul.f32 %v1666, %v1622
      %v1699 = vmul.f32 %v1666, %v1624
      %v1700 = vsel %vm1627, %v1548, %v1668
      %v1701 = vsel %vm1628, %v1550, %v1669
      %v1702 = vsel %vm1629, %v1552, %v1670
      %v1703 = vsel %vm1630, %v1554, %v1671
      %v1704 = vsel %vm1631, %v1558, %v1672
      %v1705 = vsel %vm1632, %v1560, %v1673
      %v1706 = vsel %vm1633, %v1562, %v1674
      %v1707 = vsel %vm1634, %v1564, %v1675
      %v1708 = vsel %vm1635, %v1568, %v1676
      %v1709 = vsel %vm1636, %v1570, %v1677
      %v1710 = vsel %vm1637, %v1572, %v1678
      %v1711 = vsel %vm1638, %v1574, %v1679
      %v1712 = vsel %vm1639, %v1578, %v1680
      %v1713 = vsel %vm1640, %v1580, %v1681
      %v1714 = vsel %vm1641, %v1582, %v1682
      %v1715 = vsel %vm1642, %v1584, %v1683
      %v1716 = vsel %vm1643, %v1588, %v1684
      %v1717 = vsel %vm1644, %v1590, %v1685
      %v1718 = vsel %vm1645, %v1592, %v1686
      %v1719 = vsel %vm1646, %v1594, %v1687
      %v1720 = vsel %vm1647, %v1598, %v1688
      %v1721 = vsel %vm1648, %v1600, %v1689
      %v1722 = vsel %vm1649, %v1602, %v1690
      %v1723 = vsel %vm1650, %v1604, %v1691
      %v1724 = vsel %vm1651, %v1608, %v1692
      %v1725 = vsel %vm1652, %v1610, %v1693
      %v1726 = vsel %vm1653, %v1612, %v1694
      %v1727 = vsel %vm1654, %v1614, %v1695
      %v1728 = vsel %vm1655, %v1618, %v1696
      %v1729 = vsel %vm1656, %v1620, %v1697
      %v1730 = vsel %vm1657, %v1622, %v1698
      %v1731 = vsel %vm1658, %v1624, %v1699
      %v1732 = vpack.c.bf16 %v1702, %v1700
      %v1733 = vpack.c.bf16 %v1703, %v1701
      %v1734 = vpack.c.bf16 %v1706, %v1704
      %v1735 = vpack.c.bf16 %v1707, %v1705
      %v1736 = vpack.c.bf16 %v1710, %v1708
      %v1737 = vpack.c.bf16 %v1711, %v1709
      %v1738 = vpack.c.bf16 %v1714, %v1712
      %v1739 = vpack.c.bf16 %v1715, %v1713
      %v1740 = vpack.c.bf16 %v1718, %v1716
      %v1741 = vpack.c.bf16 %v1719, %v1717
      %v1742 = vpack.c.bf16 %v1722, %v1720
      %v1743 = vpack.c.bf16 %v1723, %v1721
      %v1744 = vpack.c.bf16 %v1726, %v1724
      %v1745 = vpack.c.bf16 %v1727, %v1725
      %v1746 = vpack.c.bf16 %v1730, %v1728
      %v1747 = vpack.c.bf16 %v1731, %v1729
      %s1748 = scalar_lea.vmem %s9, 256
      %v1749 = vld [vmem:[%s1748] sm:$0xff]
      %v1750 = vld [vmem:[%s1748 + $0x8] sm:$0xff]
      %v1751 = vld [vmem:[%s1748 + $0x10] sm:$0xff]
      %v1752 = vld [vmem:[%s1748 + $0x18] sm:$0xff]
      %v1753 = vld [vmem:[%s1748 + $0x20] sm:$0xff]
      %v1754 = vld [vmem:[%s1748 + $0x28] sm:$0xff]
      %v1755 = vld [vmem:[%s1748 + $0x30] sm:$0xff]
      %v1756 = vld [vmem:[%s1748 + $0x38] sm:$0xff]
      %v1757 = vld [vmem:[%s1748 + $0x40] sm:$0xff]
      %v1758 = vld [vmem:[%s1748 + $0x48] sm:$0xff]
      %v1759 = vld [vmem:[%s1748 + $0x50] sm:$0xff]
      %v1760 = vld [vmem:[%s1748 + $0x58] sm:$0xff]
      %v1761 = vld [vmem:[%s1748 + $0x60] sm:$0xff]
      %v1762 = vld [vmem:[%s1748 + $0x68] sm:$0xff]
      %v1763 = vld [vmem:[%s1748 + $0x70] sm:$0xff]
      %v1764 = vld [vmem:[%s1748 + $0x78] sm:$0xff]
      %v1765 = vld [vmem:[%s1748 + $0x80] sm:$0xff]
      %v1766 = vld [vmem:[%s1748 + $0x88] sm:$0xff]
      %v1767 = vld [vmem:[%s1748 + $0x90] sm:$0xff]
      %v1768 = vld [vmem:[%s1748 + $0x98] sm:$0xff]
      %v1769 = vld [vmem:[%s1748 + $0xa0] sm:$0xff]
      %v1770 = vld [vmem:[%s1748 + $0xa8] sm:$0xff]
      %v1771 = vld [vmem:[%s1748 + $0xb0] sm:$0xff]
      %v1772 = vld [vmem:[%s1748 + $0xb8] sm:$0xff]
      %v1773 = vld [vmem:[%s1748 + $0xc0] sm:$0xff]
      %v1774 = vld [vmem:[%s1748 + $0xc8] sm:$0xff]
      %v1775 = vld [vmem:[%s1748 + $0xd0] sm:$0xff]
      %v1776 = vld [vmem:[%s1748 + $0xd8] sm:$0xff]
      %v1777 = vld [vmem:[%s1748 + $0xe0] sm:$0xff]
      %v1778 = vld [vmem:[%s1748 + $0xe8] sm:$0xff]
      %v1779 = vld [vmem:[%s1748 + $0xf0] sm:$0xff]
      %v1780 = vld [vmem:[%s1748 + $0xf8] sm:$0xff]
      %s1781 = scalar_lea.vmem %s10, 2
      %v1782 = vld [vmem:[%s1781] sm:$0x3]
      %v1784 = vlaneseq
      %v1785 = vshrl.u32 %v1784, 7
      %v1786 = vsub.s32 0, %v1785
      %v1787 = vrot.slane %v1782, %v1786
      %v1788 = vlaneseq
      %v1789 = vshrl.u32 %v1788, 7
      %v1790 = vsub.s32 1, %v1789
      %v1791 = vrot.slane %v1782, %v1790
      %v1826 = vunpack.c.l.b16 %v1749
      %v1827 = vunpack.c.h.b16 %v1749
      %v1828 = vunpack.c.l.b16 %v1750
      %v1829 = vunpack.c.h.b16 %v1750
      %v1830 = vunpack.c.l.b16 %v1751
      %v1831 = vunpack.c.h.b16 %v1751
      %v1832 = vunpack.c.l.b16 %v1752
      %v1833 = vunpack.c.h.b16 %v1752
      %v1834 = vunpack.c.l.b16 %v1753
      %v1835 = vunpack.c.h.b16 %v1753
      %v1836 = vunpack.c.l.b16 %v1754
      %v1837 = vunpack.c.h.b16 %v1754
      %v1838 = vunpack.c.l.b16 %v1755
      %v1839 = vunpack.c.h.b16 %v1755
      %v1840 = vunpack.c.l.b16 %v1756
      %v1841 = vunpack.c.h.b16 %v1756
      %v1842 = vunpack.c.l.b16 %v1757
      %v1843 = vunpack.c.h.b16 %v1757
      %v1844 = vunpack.c.l.b16 %v1758
      %v1845 = vunpack.c.h.b16 %v1758
      %v1846 = vunpack.c.l.b16 %v1759
      %v1847 = vunpack.c.h.b16 %v1759
      %v1848 = vunpack.c.l.b16 %v1760
      %v1849 = vunpack.c.h.b16 %v1760
      %v1850 = vunpack.c.l.b16 %v1761
      %v1851 = vunpack.c.h.b16 %v1761
      %v1852 = vunpack.c.l.b16 %v1762
      %v1853 = vunpack.c.h.b16 %v1762
      %v1854 = vunpack.c.l.b16 %v1763
      %v1855 = vunpack.c.h.b16 %v1763
      %v1856 = vunpack.c.l.b16 %v1764
      %v1857 = vunpack.c.h.b16 %v1764
      %v1858 = vunpack.c.l.b16 %v1765
      %v1859 = vunpack.c.h.b16 %v1765
      %v1860 = vunpack.c.l.b16 %v1766
      %v1861 = vunpack.c.h.b16 %v1766
      %v1862 = vunpack.c.l.b16 %v1767
      %v1863 = vunpack.c.h.b16 %v1767
      %v1864 = vunpack.c.l.b16 %v1768
      %v1865 = vunpack.c.h.b16 %v1768
      %v1866 = vunpack.c.l.b16 %v1769
      %v1867 = vunpack.c.h.b16 %v1769
      %v1868 = vunpack.c.l.b16 %v1770
      %v1869 = vunpack.c.h.b16 %v1770
      %v1870 = vunpack.c.l.b16 %v1771
      %v1871 = vunpack.c.h.b16 %v1771
      %v1872 = vunpack.c.l.b16 %v1772
      %v1873 = vunpack.c.h.b16 %v1772
      %v1874 = vunpack.c.l.b16 %v1773
      %v1875 = vunpack.c.h.b16 %v1773
      %v1876 = vunpack.c.l.b16 %v1774
      %v1877 = vunpack.c.h.b16 %v1774
      %v1878 = vunpack.c.l.b16 %v1775
      %v1879 = vunpack.c.h.b16 %v1775
      %v1880 = vunpack.c.l.b16 %v1776
      %v1881 = vunpack.c.h.b16 %v1776
      %v1882 = vunpack.c.l.b16 %v1777
      %v1883 = vunpack.c.h.b16 %v1777
      %v1884 = vunpack.c.l.b16 %v1778
      %v1885 = vunpack.c.h.b16 %v1778
      %v1886 = vunpack.c.l.b16 %v1779
      %v1887 = vunpack.c.h.b16 %v1779
      %v1888 = vunpack.c.l.b16 %v1780
      %v1889 = vunpack.c.h.b16 %v1780
      %v1890 = vpack.c.b16 %v1828, %v1826
      %v1891 = vpack.c.b16 %v1829, %v1827
      %v1892 = vpack.c.b16 %v1832, %v1830
      %v1893 = vpack.c.b16 %v1833, %v1831
      %v1894 = vpack.c.b16 %v1836, %v1834
      %v1895 = vpack.c.b16 %v1837, %v1835
      %v1896 = vpack.c.b16 %v1840, %v1838
      %v1897 = vpack.c.b16 %v1841, %v1839
      %v1898 = vpack.c.b16 %v1844, %v1842
      %v1899 = vpack.c.b16 %v1845, %v1843
      %v1900 = vpack.c.b16 %v1848, %v1846
      %v1901 = vpack.c.b16 %v1849, %v1847
      %v1902 = vpack.c.b16 %v1852, %v1850
      %v1903 = vpack.c.b16 %v1853, %v1851
      %v1904 = vpack.c.b16 %v1856, %v1854
      %v1905 = vpack.c.b16 %v1857, %v1855
      %v1906 = vpack.c.b16 %v1860, %v1858
      %v1907 = vpack.c.b16 %v1861, %v1859
      %v1908 = vpack.c.b16 %v1864, %v1862
      %v1909 = vpack.c.b16 %v1865, %v1863
      %v1910 = vpack.c.b16 %v1868, %v1866
      %v1911 = vpack.c.b16 %v1869, %v1867
      %v1912 = vpack.c.b16 %v1872, %v1870
      %v1913 = vpack.c.b16 %v1873, %v1871
      %v1914 = vpack.c.b16 %v1876, %v1874
      %v1915 = vpack.c.b16 %v1877, %v1875
      %v1916 = vpack.c.b16 %v1880, %v1878
      %v1917 = vpack.c.b16 %v1881, %v1879
      %v1918 = vpack.c.b16 %v1884, %v1882
      %v1919 = vpack.c.b16 %v1885, %v1883
      %v1920 = vpack.c.b16 %v1888, %v1886
      %v1921 = vpack.c.b16 %v1889, %v1887
      %1954 = vmatprep.subr.bf16.mxu0 %v1891
      %1955 = vmatpush1.bf16.msra.mxu0 %v1890
      %1956 = vmatprep.subr.bf16.mxu0 %v1893
      %1957 = vmatpush1.bf16.msra.mxu0 %v1892
      %1958 = vmatprep.subr.bf16.mxu0 %v1895
      %1959 = vmatpush1.bf16.msra.mxu0 %v1894
      %1960 = vmatprep.subr.bf16.mxu0 %v1897
      %1961 = vmatpush1.bf16.msra.mxu0 %v1896
      %1962 = vmatprep.subr.bf16.mxu0 %v1899
      %1963 = vmatpush1.bf16.msra.mxu0 %v1898
      %1964 = vmatprep.subr.bf16.mxu0 %v1901
      %1965 = vmatpush1.bf16.msra.mxu0 %v1900
      %1966 = vmatprep.subr.bf16.mxu0 %v1903
      %1967 = vmatpush1.bf16.msra.mxu0 %v1902
      %1968 = vmatprep.subr.bf16.mxu0 %v1905
      %1969 = vmatpush1.bf16.msra.mxu0 %v1904
      %1970 = vmatprep.subr.bf16.mxu0 %v1907
      %1971 = vmatpush1.bf16.msra.mxu0 %v1906
      %1972 = vmatprep.subr.bf16.mxu0 %v1909
      %1973 = vmatpush1.bf16.msra.mxu0 %v1908
      %1974 = vmatprep.subr.bf16.mxu0 %v1911
      %1975 = vmatpush1.bf16.msra.mxu0 %v1910
      %1976 = vmatprep.subr.bf16.mxu0 %v1913
      %1977 = vmatpush1.bf16.msra.mxu0 %v1912
      %1978 = vmatprep.subr.bf16.mxu0 %v1915
      %1979 = vmatpush1.bf16.msra.mxu0 %v1914
      %1980 = vmatprep.subr.bf16.mxu0 %v1917
      %1981 = vmatpush1.bf16.msra.mxu0 %v1916
      %1982 = vmatprep.subr.bf16.mxu0 %v1919
      %1983 = vmatpush1.bf16.msra.mxu0 %v1918
      %1984 = vmatprep.subr.bf16.mxu0 %v1921
      %1985 = vmatpush1.bf16.msra.mxu0 %v1920
      %1986 = vmatprep.mubr.bf16.mxu0 %v1733
      %1987 = vmatmul.mubr.bf16.gmra.mrb[0].mxu0 %v1732
      %v1988 = vpop.f32.mrb[0].mxu0
      %v1989 = vadd.f32 %v1787, %v1988
      %v1990 = vpop.f32.mrb[0].mxu0
      %v1991 = vadd.f32 %v1791, %v1990
      %v1992 = vpop.f32.mrb[0].mxu0
      %v1993 = vadd.f32 %v1787, %v1992
      %v1994 = vpop.f32.mrb[0].mxu0
      %v1995 = vadd.f32 %v1791, %v1994
      %1996 = vmatprep.mubr.bf16.mxu0 %v1735
      %1997 = vmatmul.mubr.bf16.gmra.mrb[0].mxu0 %v1734
      %v1998 = vpop.f32.mrb[0].mxu0
      %v1999 = vadd.f32 %v1787, %v1998
      %v2000 = vpop.f32.mrb[0].mxu0
      %v2001 = vadd.f32 %v1791, %v2000
      %v2002 = vpop.f32.mrb[0].mxu0
      %v2003 = vadd.f32 %v1787, %v2002
      %v2004 = vpop.f32.mrb[0].mxu0
      %v2005 = vadd.f32 %v1791, %v2004
      %2006 = vmatprep.mubr.bf16.mxu0 %v1737
      %2007 = vmatmul.mubr.bf16.gmra.mrb[0].mxu0 %v1736
      %v2008 = vpop.f32.mrb[0].mxu0
      %v2009 = vadd.f32 %v1787, %v2008
      %v2010 = vpop.f32.mrb[0].mxu0
      %v2011 = vadd.f32 %v1791, %v2010
      %v2012 = vpop.f32.mrb[0].mxu0
      %v2013 = vadd.f32 %v1787, %v2012
      %v2014 = vpop.f32.mrb[0].mxu0
      %v2015 = vadd.f32 %v1791, %v2014
      %2016 = vmatprep.mubr.bf16.mxu0 %v1739
      %2017 = vmatmul.mubr.bf16.gmra.mrb[0].mxu0 %v1738
      %v2018 = vpop.f32.mrb[0].mxu0
      %v2019 = vadd.f32 %v1787, %v2018
      %v2020 = vpop.f32.mrb[0].mxu0
      %v2021 = vadd.f32 %v1791, %v2020
      %v2022 = vpop.f32.mrb[0].mxu0
      %v2023 = vadd.f32 %v1787, %v2022
      %v2024 = vpop.f32.mrb[0].mxu0
      %v2025 = vadd.f32 %v1791, %v2024
      %2026 = vmatprep.mubr.bf16.mxu0 %v1741
      %2027 = vmatmul.mubr.bf16.gmra.mrb[0].mxu0 %v1740
      %v2028 = vpop.f32.mrb[0].mxu0
      %v2029 = vadd.f32 %v1787, %v2028
      %v2030 = vpop.f32.mrb[0].mxu0
      %v2031 = vadd.f32 %v1791, %v2030
      %v2032 = vpop.f32.mrb[0].mxu0
      %v2033 = vadd.f32 %v1787, %v2032
      %v2034 = vpop.f32.mrb[0].mxu0
      %v2035 = vadd.f32 %v1791, %v2034
      %2036 = vmatprep.mubr.bf16.mxu0 %v1743
      %2037 = vmatmul.mubr.bf16.gmra.mrb[0].mxu0 %v1742
      %v2038 = vpop.f32.mrb[0].mxu0
      %v2039 = vadd.f32 %v1787, %v2038
      %v2040 = vpop.f32.mrb[0].mxu0
      %v2041 = vadd.f32 %v1791, %v2040
      %v2042 = vpop.f32.mrb[0].mxu0
      %v2043 = vadd.f32 %v1787, %v2042
      %v2044 = vpop.f32.mrb[0].mxu0
      %v2045 = vadd.f32 %v1791, %v2044
      %2046 = vmatprep.mubr.bf16.mxu0 %v1745
      %2047 = vmatmul.mubr.bf16.gmra.mrb[0].mxu0 %v1744
      %v2048 = vpop.f32.mrb[0].mxu0
      %v2049 = vadd.f32 %v1787, %v2048
      %v2050 = vpop.f32.mrb[0].mxu0
      %v2051 = vadd.f32 %v1791, %v2050
      %v2052 = vpop.f32.mrb[0].mxu0
      %v2053 = vadd.f32 %v1787, %v2052
      %v2054 = vpop.f32.mrb[0].mxu0
      %v2055 = vadd.f32 %v1791, %v2054
      %2056 = vmatprep.mubr.bf16.mxu0 %v1747
      %2057 = vmatmul.mubr.bf16.gmra.mrb[0].mxu0 %v1746
      %v2058 = vpop.f32.mrb[0].mxu0
      %v2059 = vadd.f32 %v1787, %v2058
      %v2060 = vpop.f32.mrb[0].mxu0
      %v2061 = vadd.f32 %v1791, %v2060
      %v2062 = vpop.f32.mrb[0].mxu0
      %v2063 = vadd.f32 %v1787, %v2062
      %v2064 = vpop.f32.mrb[0].mxu0
      %v2065 = vadd.f32 %v1791, %v2064
      %2066 = vdwg.mxu0
      %s2067 = scalar_lea.vmem %s11, 1
      %v2068 = vld [vmem:[%s2067] sm:$0x1]
      %vm2069 = vcmp.ge.f32.partialorder %v1989, 0.0
      %vm2070 = vcmp.ge.f32.partialorder %v1991, 0.0
      %vm2071 = vcmp.ge.f32.partialorder %v1993, 0.0
      %vm2072 = vcmp.ge.f32.partialorder %v1995, 0.0
      %vm2073 = vcmp.ge.f32.partialorder %v1999, 0.0
      %vm2074 = vcmp.ge.f32.partialorder %v2001, 0.0
      %vm2075 = vcmp.ge.f32.partialorder %v2003, 0.0
      %vm2076 = vcmp.ge.f32.partialorder %v2005, 0.0
      %vm2077 = vcmp.ge.f32.partialorder %v2009, 0.0
      %vm2078 = vcmp.ge.f32.partialorder %v2011, 0.0
      %vm2079 = vcmp.ge.f32.partialorder %v2013, 0.0
      %vm2080 = vcmp.ge.f32.partialorder %v2015, 0.0
      %vm2081 = vcmp.ge.f32.partialorder %v2019, 0.0
      %vm2082 = vcmp.ge.f32.partialorder %v2021, 0.0
      %vm2083 = vcmp.ge.f32.partialorder %v2023, 0.0
      %vm2084 = vcmp.ge.f32.partialorder %v2025, 0.0
      %vm2085 = vcmp.ge.f32.partialorder %v2029, 0.0
      %vm2086 = vcmp.ge.f32.partialorder %v2031, 0.0
      %vm2087 = vcmp.ge.f32.partialorder %v2033, 0.0
      %vm2088 = vcmp.ge.f32.partialorder %v2035, 0.0
      %vm2089 = vcmp.ge.f32.partialorder %v2039, 0.0
      %vm2090 = vcmp.ge.f32.partialorder %v2041, 0.0
      %vm2091 = vcmp.ge.f32.partialorder %v2043, 0.0
      %vm2092 = vcmp.ge.f32.partialorder %v2045, 0.0
      %vm2093 = vcmp.ge.f32.partialorder %v2049, 0.0
      %vm2094 = vcmp.ge.f32.partialorder %v2051, 0.0
      %vm2095 = vcmp.ge.f32.partialorder %v2053, 0.0
      %vm2096 = vcmp.ge.f32.partialorder %v2055, 0.0
      %vm2097 = vcmp.ge.f32.partialorder %v2059, 0.0
      %vm2098 = vcmp.ge.f32.partialorder %v2061, 0.0
      %vm2099 = vcmp.ge.f32.partialorder %v2063, 0.0
      %vm2100 = vcmp.ge.f32.partialorder %v2065, 0.0
      %v2102 = vlaneseq
      %v2103 = vshrl.u32 %v2102, 7
      %v2104 = vsub.s32 0, %v2103
      %v2105 = vrot.slane %v2068, %v2104
      %2106 = vset.pattern.permute.xlu0 0
      %2107 = vperm.xlu0 %2106, %v2105
      %v2108 = vpop.permute.xlu0 %2107
      %v2110 = vmul.f32 %v2108, %v1989
      %v2111 = vmul.f32 %v2108, %v1991
      %v2112 = vmul.f32 %v2108, %v1993
      %v2113 = vmul.f32 %v2108, %v1995
      %v2114 = vmul.f32 %v2108, %v1999
      %v2115 = vmul.f32 %v2108, %v2001
      %v2116 = vmul.f32 %v2108, %v2003
      %v2117 = vmul.f32 %v2108, %v2005
      %v2118 = vmul.f32 %v2108, %v2009
      %v2119 = vmul.f32 %v2108, %v2011
      %v2120 = vmul.f32 %v2108, %v2013
      %v2121 = vmul.f32 %v2108, %v2015
      %v2122 = vmul.f32 %v2108, %v2019
      %v2123 = vmul.f32 %v2108, %v2021
      %v2124 = vmul.f32 %v2108, %v2023
      %v2125 = vmul.f32 %v2108, %v2025
      %v2126 = vmul.f32 %v2108, %v2029
      %v2127 = vmul.f32 %v2108, %v2031
      %v2128 = vmul.f32 %v2108, %v2033
      %v2129 = vmul.f32 %v2108, %v2035
      %v2130 = vmul.f32 %v2108, %v2039
      %v2131 = vmul.f32 %v2108, %v2041
      %v2132 = vmul.f32 %v2108, %v2043
      %v2133 = vmul.f32 %v2108, %v2045
      %v2134 = vmul.f32 %v2108, %v2049
      %v2135 = vmul.f32 %v2108, %v2051
      %v2136 = vmul.f32 %v2108, %v2053
      %v2137 = vmul.f32 %v2108, %v2055
      %v2138 = vmul.f32 %v2108, %v2059
      %v2139 = vmul.f32 %v2108, %v2061
      %v2140 = vmul.f32 %v2108, %v2063
      %v2141 = vmul.f32 %v2108, %v2065
      %v2142 = vsel %vm2069, %v1989, %v2110
      %v2143 = vsel %vm2070, %v1991, %v2111
      %v2144 = vsel %vm2071, %v1993, %v2112
      %v2145 = vsel %vm2072, %v1995, %v2113
      %v2146 = vsel %vm2073, %v1999, %v2114
      %v2147 = vsel %vm2074, %v2001, %v2115
      %v2148 = vsel %vm2075, %v2003, %v2116
      %v2149 = vsel %vm2076, %v2005, %v2117
      %v2150 = vsel %vm2077, %v2009, %v2118
      %v2151 = vsel %vm2078, %v2011, %v2119
      %v2152 = vsel %vm2079, %v2013, %v2120
      %v2153 = vsel %vm2080, %v2015, %v2121
      %v2154 = vsel %vm2081, %v2019, %v2122
      %v2155 = vsel %vm2082, %v2021, %v2123
      %v2156 = vsel %vm2083, %v2023, %v2124
      %v2157 = vsel %vm2084, %v2025, %v2125
      %v2158 = vsel %vm2085, %v2029, %v2126
      %v2159 = vsel %vm2086, %v2031, %v2127
      %v2160 = vsel %vm2087, %v2033, %v2128
      %v2161 = vsel %vm2088, %v2035, %v2129
      %v2162 = vsel %vm2089, %v2039, %v2130
      %v2163 = vsel %vm2090, %v2041, %v2131
      %v2164 = vsel %vm2091, %v2043, %v2132
      %v2165 = vsel %vm2092, %v2045, %v2133
      %v2166 = vsel %vm2093, %v2049, %v2134
      %v2167 = vsel %vm2094, %v2051, %v2135
      %v2168 = vsel %vm2095, %v2053, %v2136
      %v2169 = vsel %vm2096, %v2055, %v2137
      %v2170 = vsel %vm2097, %v2059, %v2138
      %v2171 = vsel %vm2098, %v2061, %v2139
      %v2172 = vsel %vm2099, %v2063, %v2140
      %v2173 = vsel %vm2100, %v2065, %v2141
      %v2174 = vld [vmem:[%s12] sm:$0x3]
      %v2176 = vlaneseq
      %v2177 = vshrl.u32 %v2176, 7
      %v2178 = vsub.s32 0, %v2177
      %v2179 = vrot.slane %v2174, %v2178
      %v2180 = vlaneseq
      %v2181 = vshrl.u32 %v2180, 7
      %v2182 = vsub.s32 1, %v2181
      %v2183 = vrot.slane %v2174, %v2182
      %v2186 = vmul.f32 %v2142, %v2179
      %v2187 = vmul.f32 %v2143, %v2183
      %v2188 = vmul.f32 %v2144, %v2179
      %v2189 = vmul.f32 %v2145, %v2183
      %v2190 = vmul.f32 %v2146, %v2179
      %v2191 = vmul.f32 %v2147, %v2183
      %v2192 = vmul.f32 %v2148, %v2179
      %v2193 = vmul.f32 %v2149, %v2183
      %v2194 = vmul.f32 %v2150, %v2179
      %v2195 = vmul.f32 %v2151, %v2183
      %v2196 = vmul.f32 %v2152, %v2179
      %v2197 = vmul.f32 %v2153, %v2183
      %v2198 = vmul.f32 %v2154, %v2179
      %v2199 = vmul.f32 %v2155, %v2183
      %v2200 = vmul.f32 %v2156, %v2179
      %v2201 = vmul.f32 %v2157, %v2183
      %v2202 = vmul.f32 %v2158, %v2179
      %v2203 = vmul.f32 %v2159, %v2183
      %v2204 = vmul.f32 %v2160, %v2179
      %v2205 = vmul.f32 %v2161, %v2183
      %v2206 = vmul.f32 %v2162, %v2179
      %v2207 = vmul.f32 %v2163, %v2183
      %v2208 = vmul.f32 %v2164, %v2179
      %v2209 = vmul.f32 %v2165, %v2183
      %v2210 = vmul.f32 %v2166, %v2179
      %v2211 = vmul.f32 %v2167, %v2183
      %v2212 = vmul.f32 %v2168, %v2179
      %v2213 = vmul.f32 %v2169, %v2183
      %v2214 = vmul.f32 %v2170, %v2179
      %v2215 = vmul.f32 %v2171, %v2183
      %v2216 = vmul.f32 %v2172, %v2179
      %v2217 = vmul.f32 %v2173, %v2183
      %v2218 = vadd.f32 %v2186, %v2187
      %2219 = vadd.xlane.f32.xlu0 %v2218
      %v2220 = vpop.xlane.xlu0 %2219
      %v2221 = vadd.f32 %v2188, %v2189
      %2222 = vadd.xlane.f32.xlu0 %v2221
      %v2223 = vpop.xlane.xlu0 %2222
      %v2224 = vadd.f32 %v2190, %v2191
      %2225 = vadd.xlane.f32.xlu0 %v2224
      %v2226 = vpop.xlane.xlu0 %2225
      %v2227 = vadd.f32 %v2192, %v2193
      %2228 = vadd.xlane.f32.xlu0 %v2227
      %v2229 = vpop.xlane.xlu0 %2228
      %v2230 = vadd.f32 %v2194, %v2195
      %2231 = vadd.xlane.f32.xlu0 %v2230
      %v2232 = vpop.xlane.xlu0 %2231
      %v2233 = vadd.f32 %v2196, %v2197
      %2234 = vadd.xlane.f32.xlu0 %v2233
      %v2235 = vpop.xlane.xlu0 %2234
      %v2236 = vadd.f32 %v2198, %v2199
      %2237 = vadd.xlane.f32.xlu0 %v2236
      %v2238 = vpop.xlane.xlu0 %2237
      %v2239 = vadd.f32 %v2200, %v2201
      %2240 = vadd.xlane.f32.xlu0 %v2239
      %v2241 = vpop.xlane.xlu0 %2240
      %v2242 = vadd.f32 %v2202, %v2203
      %2243 = vadd.xlane.f32.xlu0 %v2242
      %v2244 = vpop.xlane.xlu0 %2243
      %v2245 = vadd.f32 %v2204, %v2205
      %2246 = vadd.xlane.f32.xlu0 %v2245
      %v2247 = vpop.xlane.xlu0 %2246
      %v2248 = vadd.f32 %v2206, %v2207
      %2249 = vadd.xlane.f32.xlu0 %v2248
      %v2250 = vpop.xlane.xlu0 %2249
      %v2251 = vadd.f32 %v2208, %v2209
      %2252 = vadd.xlane.f32.xlu0 %v2251
      %v2253 = vpop.xlane.xlu0 %2252
      %v2254 = vadd.f32 %v2210, %v2211
      %2255 = vadd.xlane.f32.xlu0 %v2254
      %v2256 = vpop.xlane.xlu0 %2255
      %v2257 = vadd.f32 %v2212, %v2213
      %2258 = vadd.xlane.f32.xlu0 %v2257
      %v2259 = vpop.xlane.xlu0 %2258
      %v2260 = vadd.f32 %v2214, %v2215
      %2261 = vadd.xlane.f32.xlu0 %v2260
      %v2262 = vpop.xlane.xlu0 %2261
      %v2263 = vadd.f32 %v2216, %v2217
      %2264 = vadd.xlane.f32.xlu0 %v2263
      %v2265 = vpop.xlane.xlu0 %2264
      %v2266 = vld [vmem:[#allocation2] sm:$0x1]
      %v2268 = vlaneseq
      %v2269 = vshrl.u32 %v2268, 7
      %v2270 = vsub.s32 0, %v2269
      %v2271 = vrot.slane %v2266, %v2270
      %v2273 = vadd.f32 %v2220, %v2271
      %v2274 = vadd.f32 %v2223, %v2271
      %v2275 = vadd.f32 %v2226, %v2271
      %v2276 = vadd.f32 %v2229, %v2271
      %v2277 = vadd.f32 %v2232, %v2271
      %v2278 = vadd.f32 %v2235, %v2271
      %v2279 = vadd.f32 %v2238, %v2271
      %v2280 = vadd.f32 %v2241, %v2271
      %v2281 = vadd.f32 %v2244, %v2271
      %v2282 = vadd.f32 %v2247, %v2271
      %v2283 = vadd.f32 %v2250, %v2271
      %v2284 = vadd.f32 %v2253, %v2271
      %v2285 = vadd.f32 %v2256, %v2271
      %v2286 = vadd.f32 %v2259, %v2271
      %v2287 = vadd.f32 %v2262, %v2271
      %v2288 = vadd.f32 %v2265, %v2271
      %v2289 = vxor.u32 %v2273, 2147483648
      %v2290 = vxor.u32 %v2274, 2147483648
      %v2291 = vxor.u32 %v2275, 2147483648
      %v2292 = vxor.u32 %v2276, 2147483648
      %v2293 = vxor.u32 %v2277, 2147483648
      %v2294 = vxor.u32 %v2278, 2147483648
      %v2295 = vxor.u32 %v2279, 2147483648
      %v2296 = vxor.u32 %v2280, 2147483648
      %v2297 = vxor.u32 %v2281, 2147483648
      %v2298 = vxor.u32 %v2282, 2147483648
      %v2299 = vxor.u32 %v2283, 2147483648
      %v2300 = vxor.u32 %v2284, 2147483648
      %v2301 = vxor.u32 %v2285, 2147483648
      %v2302 = vxor.u32 %v2286, 2147483648
      %v2303 = vxor.u32 %v2287, 2147483648
      %v2304 = vxor.u32 %v2288, 2147483648
      %v2305 = vmul.f32 %v2289, 1.442695
      %v2306 = vpow.pop %v2305
      %v2307 = vmul.f32 %v2290, 1.442695
      %v2308 = vpow.pop %v2307
      %v2309 = vmul.f32 %v2291, 1.442695
      %v2310 = vpow.pop %v2309
      %v2311 = vmul.f32 %v2292, 1.442695
      %v2312 = vpow.pop %v2311
      %v2313 = vmul.f32 %v2293, 1.442695
      %v2314 = vpow.pop %v2313
      %v2315 = vmul.f32 %v2294, 1.442695
      %v2316 = vpow.pop %v2315
      %v2317 = vmul.f32 %v2295, 1.442695
      %v2318 = vpow.pop %v2317
      %v2319 = vmul.f32 %v2296, 1.442695
      %v2320 = vpow.pop %v2319
      %v2321 = vmul.f32 %v2297, 1.442695
      %v2322 = vpow.pop %v2321
      %v2323 = vmul.f32 %v2298, 1.442695
      %v2324 = vpow.pop %v2323
      %v2325 = vmul.f32 %v2299, 1.442695
      %v2326 = vpow.pop %v2325
      %v2327 = vmul.f32 %v2300, 1.442695
      %v2328 = vpow.pop %v2327
      %v2329 = vmul.f32 %v2301, 1.442695
      %v2330 = vpow.pop %v2329
      %v2331 = vmul.f32 %v2302, 1.442695
      %v2332 = vpow.pop %v2331
      %v2333 = vmul.f32 %v2303, 1.442695
      %v2334 = vpow.pop %v2333
      %v2335 = vmul.f32 %v2304, 1.442695
      %v2336 = vpow.pop %v2335
      %v2337 = vadd.f32 %v2306, 1.0
      %v2338 = vadd.f32 %v2308, 1.0
      %v2339 = vadd.f32 %v2310, 1.0
      %v2340 = vadd.f32 %v2312, 1.0
      %v2341 = vadd.f32 %v2314, 1.0
      %v2342 = vadd.f32 %v2316, 1.0
      %v2343 = vadd.f32 %v2318, 1.0
      %v2344 = vadd.f32 %v2320, 1.0
      %v2345 = vadd.f32 %v2322, 1.0
      %v2346 = vadd.f32 %v2324, 1.0
      %v2347 = vadd.f32 %v2326, 1.0
      %v2348 = vadd.f32 %v2328, 1.0
      %v2349 = vadd.f32 %v2330, 1.0
      %v2350 = vadd.f32 %v2332, 1.0
      %v2351 = vadd.f32 %v2334, 1.0
      %v2352 = vadd.f32 %v2336, 1.0
      %v2353 = vrcp.pop %v2337
      %v2354 = vmul.f32 1.0, %v2353
      %v2355 = vrcp.pop %v2338
      %v2356 = vmul.f32 1.0, %v2355
      %v2357 = vrcp.pop %v2339
      %v2358 = vmul.f32 1.0, %v2357
      %v2359 = vrcp.pop %v2340
      %v2360 = vmul.f32 1.0, %v2359
      %v2361 = vrcp.pop %v2341
      %v2362 = vmul.f32 1.0, %v2361
      %v2363 = vrcp.pop %v2342
      %v2364 = vmul.f32 1.0, %v2363
      %v2365 = vrcp.pop %v2343
      %v2366 = vmul.f32 1.0, %v2365
      %v2367 = vrcp.pop %v2344
      %v2368 = vmul.f32 1.0, %v2367
      %v2369 = vrcp.pop %v2345
      %v2370 = vmul.f32 1.0, %v2369
      %v2371 = vrcp.pop %v2346
      %v2372 = vmul.f32 1.0, %v2371
      %v2373 = vrcp.pop %v2347
      %v2374 = vmul.f32 1.0, %v2373
      %v2375 = vrcp.pop %v2348
      %v2376 = vmul.f32 1.0, %v2375
      %v2377 = vrcp.pop %v2349
      %v2378 = vmul.f32 1.0, %v2377
      %v2379 = vrcp.pop %v2350
      %v2380 = vmul.f32 1.0, %v2379
      %v2381 = vrcp.pop %v2351
      %v2382 = vmul.f32 1.0, %v2381
      %v2383 = vrcp.pop %v2352
      %v2384 = vmul.f32 1.0, %v2383
      %vm2385 = vcmask 7168
      %2386 = vst.msk [vmem:[%s537] sm:$0xff] %vm2385, %v2354
      %2387 = vst.msk [vmem:[%s537 + $0x8] sm:$0xff] %vm2385, %v2356
      %2388 = vst.msk [vmem:[%s537 + $0x10] sm:$0xff] %vm2385, %v2358
      %2389 = vst.msk [vmem:[%s537 + $0x18] sm:$0xff] %vm2385, %v2360
      %2390 = vst.msk [vmem:[%s537 + $0x20] sm:$0xff] %vm2385, %v2362
      %2391 = vst.msk [vmem:[%s537 + $0x28] sm:$0xff] %vm2385, %v2364
      %2392 = vst.msk [vmem:[%s537 + $0x30] sm:$0xff] %vm2385, %v2366
      %2393 = vst.msk [vmem:[%s537 + $0x38] sm:$0xff] %vm2385, %v2368
      %2394 = vst.msk [vmem:[%s537 + $0x40] sm:$0xff] %vm2385, %v2370
      %2395 = vst.msk [vmem:[%s537 + $0x48] sm:$0xff] %vm2385, %v2372
      %2396 = vst.msk [vmem:[%s537 + $0x50] sm:$0xff] %vm2385, %v2374
      %2397 = vst.msk [vmem:[%s537 + $0x58] sm:$0xff] %vm2385, %v2376
      %2398 = vst.msk [vmem:[%s537 + $0x60] sm:$0xff] %vm2385, %v2378
      %2399 = vst.msk [vmem:[%s537 + $0x68] sm:$0xff] %vm2385, %v2380
      %2400 = vst.msk [vmem:[%s537 + $0x70] sm:$0xff] %vm2385, %v2382
      %2401 = vst.msk [vmem:[%s537 + $0x78] sm:$0xff] %vm2385, %v2384
      %s2402 = smul.u32 16, %s27
      %p2403 = scmp.lt.s32.totalorder %s2402, 31
      %s2404 = scalar_select %p2403, %s2402, 31
      %s2405 = smul.addr %s2404, 8
      %s2406 = scalar_lea.vmem %s14, %s2405
      // Predicated region
      $region77: #{tpu_custom_call.1} parent=75 // pred_check
        %p2407 = pneg %p359
      $region78: #{tpu_custom_call.1} parent=75 // pred_check_branch
        %2409 = sbr.rel (%p2407) target = $region80
      $region79: #{tpu_custom_call.1} parent=75 // pred_region
        %s2410 = smul.u32 16, %s27
      $region80: #{tpu_custom_call.1} parent=75 // pred_fallthru
        _
    $region76: #{tpu_custom_call.1} parent=5 // pred_fallthru
      _
    %p2411 = scmp.le.s32.totalorder 2, %s22
    // Predicated region
    $region81: #{tpu_custom_call.1} parent=5 // pred_check
      %p2412 = pneg %p2411
    $region82: #{tpu_custom_call.1} parent=5 // pred_check_branch
      %2414 = sbr.rel (%p2412) target = $region84
    $region83: #{tpu_custom_call.1} parent=5 // pred_region
      %s2415 = ssub.s32 %s22, 2
      // Predicated region
      $region85: #{tpu_custom_call.1} parent=83 // pred_check
        %p2416 = pneg %p365
      $region86: #{tpu_custom_call.1} parent=83 // pred_check_branch
        %2418 = sbr.rel (%p2416) target = $region88
      $region87: #{tpu_custom_call.1} parent=83 // pred_region
        %s2419 = smul.u32 16, %s28
        %p2420 = scmp.lt.s32.totalorder %s2419, 31
        %s2421 = scalar_select %p2420, %s2419, 31
        %s2422 = smul.addr %s2421, 8
        %s2423 = scalar_lea.vmem %s14, %s2422
      $region88: #{tpu_custom_call.1} parent=83 // pred_fallthru
        _
    $region84: #{tpu_custom_call.1} parent=5 // pred_fallthru
      _
  $region6: #{tpu_custom_call.1} parent=0 // loop_footer
    %s26 = sadd.s32 1, %s22
  $region7: #{tpu_custom_call.1} parent=0 // loop_footer_branch
    %21 = sbr.rel target = $region3
  $region8: #{tpu_custom_call.1} parent=0 // loop_exit
    _

</llo_original>
